<compile_context>
chip_gen: v5e
topology: v5e:2x2
jax: 0.10.0
libtpu: 0.0.40
codegen_flags: <defaults>
</compile_context>

<pallas_src>
import functools

import jax
import jax.numpy as jnp
from jax.experimental import pallas as pl
from jax.experimental.pallas import tpu as pltpu

LN_EPS = 1e-5


# ---------------------------------------------------------------------------
# Fused decoder-layer kernel (one batch element per grid step)
# ---------------------------------------------------------------------------

def _decoder_layer_kernel(
    tgt_ref, epos_ref, mem_ref, mpos_ref,
    sa_win_ref, sa_bin_ref, sa_wo_ref, sa_bo_ref,
    n2_g_ref, n2_b_ref,
    ca_win_ref, ca_bin_ref, ca_wo_ref, ca_bo_ref,
    n1_g_ref, n1_b_ref,
    w1_ref, b1_ref, w2_ref, b2_ref,
    n3_g_ref, n3_b_ref,
    out_ref,
    *, nhead,
):
    f32 = jnp.float32
    bf16 = jnp.bfloat16

    E = tgt_ref.shape[-1]
    hd = E // nhead
    scale = 1.0 / float(hd) ** 0.5

    def matmul(x, w, b=None):
        # bf16 MXU operands, f32 accumulation
        y = jnp.dot(x.astype(bf16), w.astype(bf16), preferred_element_type=f32)
        return y if b is None else y + b

    def layernorm(z, g, b):
        mu = jnp.mean(z, axis=-1, keepdims=True)
        var = jnp.mean(jnp.square(z - mu), axis=-1, keepdims=True)
        return (z - mu) * jax.lax.rsqrt(var + LN_EPS) * g + b

    def mha_core(q2, k2, v2):
        # q2:(Lq,E)  k2,v2:(S,E)  -> (Lq,E).  All heads in one invocation.
        outs = []
        for h in range(nhead):
            sl = slice(h * hd, (h + 1) * hd)
            qh = (q2[:, sl] * scale).astype(bf16)
            kh = k2[:, sl].astype(bf16)
            vh = v2[:, sl].astype(bf16)
            # contract last dims of both operands (no explicit transpose)
            s = jax.lax.dot_general(
                qh, kh, (((1,), (1,)), ((), ())), preferred_element_type=f32
            )                                                         # (Lq, S) f32
            m = jnp.max(s, axis=-1, keepdims=True)
            e = jnp.exp(s - m)                                        # EUP, f32
            inv = pl.reciprocal(jnp.sum(e, axis=-1, keepdims=True), approx=True)
            p = (e * inv).astype(bf16)
            outs.append(jnp.dot(p, vh, preferred_element_type=f32))   # (Lq, hd)
        return jnp.concatenate(outs, axis=-1)                         # (Lq, E)

    tgt = tgt_ref[...]
    epos = epos_ref[...]
    mem = mem_ref[...]
    mpos = mpos_ref[...]

    # ---------------- self attention + norm2 ----------------
    w_in = sa_win_ref[...]
    b_in = sa_bin_ref[...]
    qk_in = tgt + epos                                   # with_pos_embed
    qk_proj = matmul(qk_in, w_in[:, : 2 * E], b_in[:, : 2 * E])   # fused Q|K proj
    q2 = qk_proj[:, :E]
    k2 = qk_proj[:, E:]
    v2 = matmul(tgt, w_in[:, 2 * E:], b_in[:, 2 * E:])
    sa = mha_core(q2, k2, v2)
    sa = matmul(sa, sa_wo_ref[...], sa_bo_ref[...])
    x = layernorm(tgt + sa, n2_g_ref[...], n2_b_ref[...])

    # ---------------- cross attention + norm1 ----------------
    w_in = ca_win_ref[...]
    b_in = ca_bin_ref[...]
    q2 = matmul(x + epos, w_in[:, :E], b_in[:, :E])
    k2 = matmul(mem + mpos, w_in[:, E: 2 * E], b_in[:, E: 2 * E])
    v2 = matmul(mem, w_in[:, 2 * E:], b_in[:, 2 * E:])
    ca = mha_core(q2, k2, v2)
    ca = matmul(ca, ca_wo_ref[...], ca_bo_ref[...])
    x = layernorm(x + ca, n1_g_ref[...], n1_b_ref[...])

    # ---------------- FFN + norm3 ----------------
    h = jnp.maximum(matmul(x, w1_ref[...], b1_ref[...]), 0.0)        # ReLU
    t2 = matmul(h, w2_ref[...], b2_ref[...])
    out_ref[...] = layernorm(x + t2, n3_g_ref[...], n3_b_ref[...])


# ---------------------------------------------------------------------------
# Wrapper
# ---------------------------------------------------------------------------

def transformer_decoder_layer(params, tgt_entity, entity_pos, memory, pos, nhead):
    """tgt_entity, entity_pos: (L, N, E); memory, pos: (S, N, E) -> (L, N, E)"""
    L, N, E = tgt_entity.shape
    S = memory.shape[0]

    # batch-first layout so each grid step sees a lane-dense (seq, E) slab
    tgt_b = jnp.transpose(tgt_entity, (1, 0, 2))
    epos_b = jnp.transpose(entity_pos, (1, 0, 2))
    mem_b = jnp.transpose(memory, (1, 0, 2))
    mpos_b = jnp.transpose(pos, (1, 0, 2))

    sa, ca = params["sa"], params["ca"]
    param_list = [
        sa["w_in"], sa["b_in"], sa["w_out"], sa["b_out"],
        params["n2_g"], params["n2_b"],
        ca["w_in"], ca["b_in"], ca["w_out"], ca["b_out"],
        params["n1_g"], params["n1_b"],
        params["w1"], params["b1"], params["w2"], params["b2"],
        params["n3_g"], params["n3_b"],
    ]

    def act_spec(seq):
        # batch dim squeezed; kernel sees (seq, E)
        return pl.BlockSpec((None, seq, E), lambda n: (n, 0, 0))

    def full_spec(p):
        # whole (2-D) parameter resident across grid steps
        return pl.BlockSpec(p.shape, lambda n: (0, 0))

    kern = functools.partial(_decoder_layer_kernel, nhead=nhead)
    out_b = pl.pallas_call(
        kern,
        out_shape=jax.ShapeDtypeStruct((N, L, E), jnp.float32),
        grid=(N,),
        in_specs=[act_spec(L), act_spec(L), act_spec(S), act_spec(S)]
        + [full_spec(p) for p in param_list],
        out_specs=pl.BlockSpec((None, L, E), lambda n: (n, 0, 0)),
        compiler_params=pltpu.CompilerParams(dimension_semantics=("parallel",)),
    )(tgt_b, epos_b, mem_b, mpos_b, *param_list)

    return jnp.transpose(out_b, (1, 0, 2))


# ---------------------------------------------------------------------------
# Deterministic parameter initialization
#   attention in-proj stored fused as (E, 3E) with columns [q | k | v]
#   matmul weights stored in bf16 (f32 accumulation in-kernel); biases / LN in f32
# ---------------------------------------------------------------------------

def init_params(key, d_model, nhead, dim_ff):
    ks = jax.random.split(key, 8)

    def lin(k, fi, fo, s=0.05):
        return jax.random.normal(k, (fi, fo), jnp.float32) * s

    def vec(k, n, s=0.02):
        return jax.random.normal(k, (1, n), jnp.float32) * s

    def mha(k):
        sub = jax.random.split(k, 6)
        w_in = jnp.concatenate(
            [lin(sub[0], d_model, d_model),
             lin(sub[1], d_model, d_model),
             lin(sub[2], d_model, d_model)], axis=1)          # (E, 3E) = [q|k|v]
        return {
            "w_in": w_in.astype(jnp.bfloat16),
            "b_in": vec(sub[3], 3 * d_model),
            "w_out": lin(sub[4], d_model, d_model).astype(jnp.bfloat16),
            "b_out": vec(sub[5], d_model),
        }

    def ln_params(k):
        s1, s2 = jax.random.split(k)
        return (jnp.ones((1, d_model), jnp.float32) + vec(s1, d_model, 0.1),
                vec(s2, d_model, 0.1))

    n2_g, n2_b = ln_params(ks[2])
    n1_g, n1_b = ln_params(ks[3])
    n3_g, n3_b = ln_params(ks[4])
    kf = jax.random.split(ks[5], 4)

    return {
        "sa": mha(ks[0]),
        "ca": mha(ks[1]),
        "n2_g": n2_g, "n2_b": n2_b,
        "n1_g": n1_g, "n1_b": n1_b,
        "n3_g": n3_g, "n3_b": n3_b,
        "w1": lin(kf[0], d_model, dim_ff).astype(jnp.bfloat16), "b1": vec(kf[1], dim_ff),
        "w2": lin(kf[2], dim_ff, d_model).astype(jnp.bfloat16), "b2": vec(kf[3], d_model),
    }


# ---------------------------------------------------------------------------
# Pure-JAX f32 reference (same weight values; f32 math everywhere)
# ---------------------------------------------------------------------------

def _ref_mha(q, k, v, p, nhead):
    Lq, N, E = q.shape
    S = k.shape[0]
    hd = E // nhead
    w_in = p["w_in"].astype(jnp.float32)
    b_in = p["b_in"][0]
    wq, wk, wv = w_in[:, :E], w_in[:, E:2 * E], w_in[:, 2 * E:]
    bq, bk, bv = b_in[:E], b_in[E:2 * E], b_in[2 * E:]
    q2 = q @ wq + bq
    k2 = k @ wk + bk
    v2 = v @ wv + bv

    def split(x, Ls):
        return x.reshape(Ls, N, nhead, hd).transpose(1, 2, 0, 3)   # (N,H,Ls,hd)

    qh = split(q2, Lq) * (1.0 / float(hd) ** 0.5)
    kh = split(k2, S)
    vh = split(v2, S)
    s = jnp.einsum("nhld,nhsd->nhls", qh, kh)
    a = jax.nn.softmax(s, axis=-1)
    o = jnp.einsum("nhls,nhsd->nhld", a, vh)
    o = o.transpose(2, 0, 1, 3).reshape(Lq, N, E)
    return o @ p["w_out"].astype(jnp.float32) + p["b_out"][0]


def _ref_layer(params, tgt, epos, mem, pos, nhead):
    def ln(z, g, b):
        mu = z.mean(-1, keepdims=True)
        var = ((z - mu) ** 2).mean(-1, keepdims=True)
        return (z - mu) / jnp.sqrt(var + LN_EPS) * g[0] + b[0]

    sa = _ref_mha(tgt + epos, tgt + epos, tgt, params["sa"], nhead)
    x = ln(tgt + sa, params["n2_g"], params["n2_b"])
    ca = _ref_mha(x + epos, mem + pos, mem, params["ca"], nhead)
    x = ln(x + ca, params["n1_g"], params["n1_b"])
    h = jax.nn.relu(x @ params["w1"].astype(jnp.float32) + params["b1"][0])
    t2 = h @ params["w2"].astype(jnp.float32) + params["b2"][0]
    return ln(x + t2, params["n3_g"], params["n3_b"])


# ---------------------------------------------------------------------------

if __name__ == "__main__":
    d_model, nhead, dim_ff = 32, 4, 64
    L, S, N = 8, 8, 2          # tgt seq len, memory seq len, batch

    key = jax.random.PRNGKey(0)
    k1, k2, k3, k4, kp = jax.random.split(key, 5)
    tgt_entity = jax.random.normal(k1, (L, N, d_model), jnp.float32)
    entity_pos = jax.random.normal(k2, (L, N, d_model), jnp.float32)
    memory = jax.random.normal(k3, (S, N, d_model), jnp.float32)
    pos = jax.random.normal(k4, (S, N, d_model), jnp.float32)

    params = init_params(kp, d_model, nhead, dim_ff)

    fwd = jax.jit(functools.partial(transformer_decoder_layer, nhead=nhead))
    out = fwd(params, tgt_entity, entity_pos, memory, pos)
    out = jax.block_until_ready(out)
    assert out.shape == (L, N, d_model)
    assert bool(jnp.all(jnp.isfinite(out)))

    ref = _ref_layer(params, tgt_entity, entity_pos, memory, pos, nhead)
    err = float(jnp.max(jnp.abs(out - ref)))
    assert err < 5e-2, f"kernel vs reference mismatch: max abs err = {err}"

    print("KERNEL_OK")
</pallas_src>

<mosaic_0001>
module attributes {stable_mosaic.version = 11 : i64} {
  func.func @_decoder_layer_kernel(%arg0: i32, %arg1: memref<1x8x32xf32, #tpu.memory_space<vmem>>, %arg2: memref<1x8x32xf32, #tpu.memory_space<vmem>>, %arg3: memref<1x8x32xf32, #tpu.memory_space<vmem>>, %arg4: memref<1x8x32xf32, #tpu.memory_space<vmem>>, %arg5: memref<32x96xbf16, #tpu.memory_space<vmem>>, %arg6: memref<1x96xf32, #tpu.memory_space<vmem>>, %arg7: memref<32x32xbf16, #tpu.memory_space<vmem>>, %arg8: memref<1x32xf32, #tpu.memory_space<vmem>>, %arg9: memref<1x32xf32, #tpu.memory_space<vmem>>, %arg10: memref<1x32xf32, #tpu.memory_space<vmem>>, %arg11: memref<32x96xbf16, #tpu.memory_space<vmem>>, %arg12: memref<1x96xf32, #tpu.memory_space<vmem>>, %arg13: memref<32x32xbf16, #tpu.memory_space<vmem>>, %arg14: memref<1x32xf32, #tpu.memory_space<vmem>>, %arg15: memref<1x32xf32, #tpu.memory_space<vmem>>, %arg16: memref<1x32xf32, #tpu.memory_space<vmem>>, %arg17: memref<32x64xbf16, #tpu.memory_space<vmem>>, %arg18: memref<1x64xf32, #tpu.memory_space<vmem>>, %arg19: memref<64x32xbf16, #tpu.memory_space<vmem>>, %arg20: memref<1x32xf32, #tpu.memory_space<vmem>>, %arg21: memref<1x32xf32, #tpu.memory_space<vmem>>, %arg22: memref<1x32xf32, #tpu.memory_space<vmem>>, %arg23: memref<1x8x32xf32, #tpu.memory_space<vmem>>) attributes {dimension_semantics = [#tpu.dimension_semantics<parallel>], iteration_bounds = array<i64: 2>, scalar_prefetch = 0 : i64, scratch_operands = 0 : i64, tpu.core_type = #tpu.core_type<tc>, window_params = [{transform_indices = @transform_0, window_bounds = array<i64: 1, 8, 32>}, {transform_indices = @transform_1, window_bounds = array<i64: 1, 8, 32>}, {transform_indices = @transform_2, window_bounds = array<i64: 1, 8, 32>}, {transform_indices = @transform_3, window_bounds = array<i64: 1, 8, 32>}, {pipeline_mode = #tpu.pipeline_mode<synchronous>, transform_indices = @transform_4, window_bounds = array<i64: 32, 96>}, {pipeline_mode = #tpu.pipeline_mode<synchronous>, transform_indices = @transform_5, window_bounds = array<i64: 1, 96>}, {pipeline_mode = #tpu.pipeline_mode<synchronous>, transform_indices = @transform_6, window_bounds = array<i64: 32, 32>}, {pipeline_mode = #tpu.pipeline_mode<synchronous>, transform_indices = @transform_7, window_bounds = array<i64: 1, 32>}, {pipeline_mode = #tpu.pipeline_mode<synchronous>, transform_indices = @transform_8, window_bounds = array<i64: 1, 32>}, {pipeline_mode = #tpu.pipeline_mode<synchronous>, transform_indices = @transform_9, window_bounds = array<i64: 1, 32>}, {pipeline_mode = #tpu.pipeline_mode<synchronous>, transform_indices = @transform_10, window_bounds = array<i64: 32, 96>}, {pipeline_mode = #tpu.pipeline_mode<synchronous>, transform_indices = @transform_11, window_bounds = array<i64: 1, 96>}, {pipeline_mode = #tpu.pipeline_mode<synchronous>, transform_indices = @transform_12, window_bounds = array<i64: 32, 32>}, {pipeline_mode = #tpu.pipeline_mode<synchronous>, transform_indices = @transform_13, window_bounds = array<i64: 1, 32>}, {pipeline_mode = #tpu.pipeline_mode<synchronous>, transform_indices = @transform_14, window_bounds = array<i64: 1, 32>}, {pipeline_mode = #tpu.pipeline_mode<synchronous>, transform_indices = @transform_15, window_bounds = array<i64: 1, 32>}, {pipeline_mode = #tpu.pipeline_mode<synchronous>, transform_indices = @transform_16, window_bounds = array<i64: 32, 64>}, {pipeline_mode = #tpu.pipeline_mode<synchronous>, transform_indices = @transform_17, window_bounds = array<i64: 1, 64>}, {pipeline_mode = #tpu.pipeline_mode<synchronous>, transform_indices = @transform_18, window_bounds = array<i64: 64, 32>}, {pipeline_mode = #tpu.pipeline_mode<synchronous>, transform_indices = @transform_19, window_bounds = array<i64: 1, 32>}, {pipeline_mode = #tpu.pipeline_mode<synchronous>, transform_indices = @transform_20, window_bounds = array<i64: 1, 32>}, {pipeline_mode = #tpu.pipeline_mode<synchronous>, transform_indices = @transform_21, window_bounds = array<i64: 1, 32>}, {transform_indices = @transform_22, window_bounds = array<i64: 1, 8, 32>}]} {
    %c0 = arith.constant 0 : index
    %c0_0 = arith.constant 0 : index
    %c0_1 = arith.constant 0 : index
    %0 = vector.load %arg1[%c0, %c0_0, %c0_1] : memref<1x8x32xf32, #tpu.memory_space<vmem>>, vector<1x8x32xf32>
    %1 = vector.shape_cast %0 : vector<1x8x32xf32> to vector<8x32xf32>
    %c0_2 = arith.constant 0 : index
    %c0_3 = arith.constant 0 : index
    %c0_4 = arith.constant 0 : index
    %2 = vector.load %arg2[%c0_2, %c0_3, %c0_4] : memref<1x8x32xf32, #tpu.memory_space<vmem>>, vector<1x8x32xf32>
    %3 = vector.shape_cast %2 : vector<1x8x32xf32> to vector<8x32xf32>
    %c0_5 = arith.constant 0 : index
    %c0_6 = arith.constant 0 : index
    %c0_7 = arith.constant 0 : index
    %4 = vector.load %arg3[%c0_5, %c0_6, %c0_7] : memref<1x8x32xf32, #tpu.memory_space<vmem>>, vector<1x8x32xf32>
    %5 = vector.shape_cast %4 : vector<1x8x32xf32> to vector<8x32xf32>
    %c0_8 = arith.constant 0 : index
    %c0_9 = arith.constant 0 : index
    %c0_10 = arith.constant 0 : index
    %6 = vector.load %arg4[%c0_8, %c0_9, %c0_10] : memref<1x8x32xf32, #tpu.memory_space<vmem>>, vector<1x8x32xf32>
    %7 = vector.shape_cast %6 : vector<1x8x32xf32> to vector<8x32xf32>
    %c0_11 = arith.constant 0 : index
    %c0_12 = arith.constant 0 : index
    %8 = vector.load %arg5[%c0_11, %c0_12] : memref<32x96xbf16, #tpu.memory_space<vmem>>, vector<32x96xbf16>
    %c0_13 = arith.constant 0 : index
    %c0_14 = arith.constant 0 : index
    %9 = vector.load %arg6[%c0_13, %c0_14] : memref<1x96xf32, #tpu.memory_space<vmem>>, vector<1x96xf32>
    %10 = arith.addf %1, %3 : vector<8x32xf32>
    %11 = vector.extract_strided_slice %8 {offsets = [0, 0], sizes = [32, 64], strides = [1, 1]} : vector<32x96xbf16> to vector<32x64xbf16>
    %12 = vector.extract_strided_slice %9 {offsets = [0, 0], sizes = [1, 64], strides = [1, 1]} : vector<1x96xf32> to vector<1x64xf32>
    %13 = arith.truncf %10 : vector<8x32xf32> to vector<8x32xbf16>
    %cst = arith.constant dense<0.000000e+00> : vector<8x64xf32>
    %14 = tpu.matmul %13, %11, %cst {dimension_numbers = #tpu.dot_dimension_numbers<[1], [0], [0], [1], [0, 0, 1, 1], [], []>} : vector<8x32xbf16>, vector<32x64xbf16>, vector<8x64xf32> -> vector<8x64xf32>
    %15 = vector.broadcast %12 : vector<1x64xf32> to vector<8x64xf32>
    %16 = arith.addf %14, %15 : vector<8x64xf32>
    %17 = vector.extract_strided_slice %16 {offsets = [0, 0], sizes = [8, 32], strides = [1, 1]} : vector<8x64xf32> to vector<8x32xf32>
    %18 = vector.extract_strided_slice %16 {offsets = [0, 32], sizes = [8, 32], strides = [1, 1]} : vector<8x64xf32> to vector<8x32xf32>
    %19 = vector.extract_strided_slice %8 {offsets = [0, 64], sizes = [32, 32], strides = [1, 1]} : vector<32x96xbf16> to vector<32x32xbf16>
    %20 = vector.extract_strided_slice %9 {offsets = [0, 64], sizes = [1, 32], strides = [1, 1]} : vector<1x96xf32> to vector<1x32xf32>
    %21 = arith.truncf %1 : vector<8x32xf32> to vector<8x32xbf16>
    %cst_15 = arith.constant dense<0.000000e+00> : vector<8x32xf32>
    %22 = tpu.matmul %21, %19, %cst_15 {dimension_numbers = #tpu.dot_dimension_numbers<[1], [0], [0], [1], [0, 0, 1, 1], [], []>} : vector<8x32xbf16>, vector<32x32xbf16>, vector<8x32xf32> -> vector<8x32xf32>
    %23 = vector.broadcast %20 : vector<1x32xf32> to vector<8x32xf32>
    %24 = arith.addf %22, %23 : vector<8x32xf32>
    %25 = vector.extract_strided_slice %17 {offsets = [0, 0], sizes = [8, 8], strides = [1, 1]} : vector<8x32xf32> to vector<8x8xf32>
    %cst_16 = arith.constant 0.353553385 : f32
    %26 = vector.broadcast %cst_16 : f32 to vector<8x8xf32>
    %27 = arith.mulf %25, %26 : vector<8x8xf32>
    %28 = arith.truncf %27 : vector<8x8xf32> to vector<8x8xbf16>
    %29 = vector.extract_strided_slice %18 {offsets = [0, 0], sizes = [8, 8], strides = [1, 1]} : vector<8x32xf32> to vector<8x8xf32>
    %30 = arith.truncf %29 : vector<8x8xf32> to vector<8x8xbf16>
    %31 = vector.extract_strided_slice %24 {offsets = [0, 0], sizes = [8, 8], strides = [1, 1]} : vector<8x32xf32> to vector<8x8xf32>
    %32 = arith.truncf %31 : vector<8x8xf32> to vector<8x8xbf16>
    %cst_17 = arith.constant dense<0.000000e+00> : vector<8x8xf32>
    %33 = tpu.matmul %28, %30, %cst_17 {dimension_numbers = #tpu.dot_dimension_numbers<[1], [1], [0], [0], [0, 0, 1, 0], [], []>} : vector<8x8xbf16>, vector<8x8xbf16>, vector<8x8xf32> -> vector<8x8xf32>
    %cst_18 = arith.constant dense<0xFF800000> : vector<8xf32>
    %34 = vector.multi_reduction <maximumf>, %33, %cst_18 [1] : vector<8x8xf32> to vector<8xf32>
    %35 = vector.shape_cast %34 : vector<8xf32> to vector<8x1xf32>
    %36 = vector.broadcast %35 : vector<8x1xf32> to vector<8x8xf32>
    %37 = arith.subf %33, %36 : vector<8x8xf32>
    %38 = math.exp %37 : vector<8x8xf32>
    %cst_19 = arith.constant dense<0.000000e+00> : vector<8xf32>
    %39 = vector.multi_reduction <add>, %38, %cst_19 [1] : vector<8x8xf32> to vector<8xf32>
    %40 = vector.shape_cast %39 : vector<8xf32> to vector<8x1xf32>
    %41 = tpu.reciprocal %40 {approx = true} : vector<8x1xf32> -> vector<8x1xf32>
    %42 = vector.broadcast %41 : vector<8x1xf32> to vector<8x8xf32>
    %43 = arith.mulf %38, %42 : vector<8x8xf32>
    %44 = arith.truncf %43 : vector<8x8xf32> to vector<8x8xbf16>
    %cst_20 = arith.constant dense<0.000000e+00> : vector<8x8xf32>
    %45 = tpu.matmul %44, %32, %cst_20 {dimension_numbers = #tpu.dot_dimension_numbers<[1], [0], [0], [1], [0, 0, 1, 1], [], []>} : vector<8x8xbf16>, vector<8x8xbf16>, vector<8x8xf32> -> vector<8x8xf32>
    %46 = vector.extract_strided_slice %17 {offsets = [0, 8], sizes = [8, 8], strides = [1, 1]} : vector<8x32xf32> to vector<8x8xf32>
    %cst_21 = arith.constant 0.353553385 : f32
    %47 = vector.broadcast %cst_21 : f32 to vector<8x8xf32>
    %48 = arith.mulf %46, %47 : vector<8x8xf32>
    %49 = arith.truncf %48 : vector<8x8xf32> to vector<8x8xbf16>
    %50 = vector.extract_strided_slice %18 {offsets = [0, 8], sizes = [8, 8], strides = [1, 1]} : vector<8x32xf32> to vector<8x8xf32>
    %51 = arith.truncf %50 : vector<8x8xf32> to vector<8x8xbf16>
    %52 = vector.extract_strided_slice %24 {offsets = [0, 8], sizes = [8, 8], strides = [1, 1]} : vector<8x32xf32> to vector<8x8xf32>
    %53 = arith.truncf %52 : vector<8x8xf32> to vector<8x8xbf16>
    %cst_22 = arith.constant dense<0.000000e+00> : vector<8x8xf32>
    %54 = tpu.matmul %49, %51, %cst_22 {dimension_numbers = #tpu.dot_dimension_numbers<[1], [1], [0], [0], [0, 0, 1, 0], [], []>} : vector<8x8xbf16>, vector<8x8xbf16>, vector<8x8xf32> -> vector<8x8xf32>
    %cst_23 = arith.constant dense<0xFF800000> : vector<8xf32>
    %55 = vector.multi_reduction <maximumf>, %54, %cst_23 [1] : vector<8x8xf32> to vector<8xf32>
    %56 = vector.shape_cast %55 : vector<8xf32> to vector<8x1xf32>
    %57 = vector.broadcast %56 : vector<8x1xf32> to vector<8x8xf32>
    %58 = arith.subf %54, %57 : vector<8x8xf32>
    %59 = math.exp %58 : vector<8x8xf32>
    %cst_24 = arith.constant dense<0.000000e+00> : vector<8xf32>
    %60 = vector.multi_reduction <add>, %59, %cst_24 [1] : vector<8x8xf32> to vector<8xf32>
    %61 = vector.shape_cast %60 : vector<8xf32> to vector<8x1xf32>
    %62 = tpu.reciprocal %61 {approx = true} : vector<8x1xf32> -> vector<8x1xf32>
    %63 = vector.broadcast %62 : vector<8x1xf32> to vector<8x8xf32>
    %64 = arith.mulf %59, %63 : vector<8x8xf32>
    %65 = arith.truncf %64 : vector<8x8xf32> to vector<8x8xbf16>
    %cst_25 = arith.constant dense<0.000000e+00> : vector<8x8xf32>
    %66 = tpu.matmul %65, %53, %cst_25 {dimension_numbers = #tpu.dot_dimension_numbers<[1], [0], [0], [1], [0, 0, 1, 1], [], []>} : vector<8x8xbf16>, vector<8x8xbf16>, vector<8x8xf32> -> vector<8x8xf32>
    %67 = vector.extract_strided_slice %17 {offsets = [0, 16], sizes = [8, 8], strides = [1, 1]} : vector<8x32xf32> to vector<8x8xf32>
    %cst_26 = arith.constant 0.353553385 : f32
    %68 = vector.broadcast %cst_26 : f32 to vector<8x8xf32>
    %69 = arith.mulf %67, %68 : vector<8x8xf32>
    %70 = arith.truncf %69 : vector<8x8xf32> to vector<8x8xbf16>
    %71 = vector.extract_strided_slice %18 {offsets = [0, 16], sizes = [8, 8], strides = [1, 1]} : vector<8x32xf32> to vector<8x8xf32>
    %72 = arith.truncf %71 : vector<8x8xf32> to vector<8x8xbf16>
    %73 = vector.extract_strided_slice %24 {offsets = [0, 16], sizes = [8, 8], strides = [1, 1]} : vector<8x32xf32> to vector<8x8xf32>
    %74 = arith.truncf %73 : vector<8x8xf32> to vector<8x8xbf16>
    %cst_27 = arith.constant dense<0.000000e+00> : vector<8x8xf32>
    %75 = tpu.matmul %70, %72, %cst_27 {dimension_numbers = #tpu.dot_dimension_numbers<[1], [1], [0], [0], [0, 0, 1, 0], [], []>} : vector<8x8xbf16>, vector<8x8xbf16>, vector<8x8xf32> -> vector<8x8xf32>
    %cst_28 = arith.constant dense<0xFF800000> : vector<8xf32>
    %76 = vector.multi_reduction <maximumf>, %75, %cst_28 [1] : vector<8x8xf32> to vector<8xf32>
    %77 = vector.shape_cast %76 : vector<8xf32> to vector<8x1xf32>
    %78 = vector.broadcast %77 : vector<8x1xf32> to vector<8x8xf32>
    %79 = arith.subf %75, %78 : vector<8x8xf32>
    %80 = math.exp %79 : vector<8x8xf32>
    %cst_29 = arith.constant dense<0.000000e+00> : vector<8xf32>
    %81 = vector.multi_reduction <add>, %80, %cst_29 [1] : vector<8x8xf32> to vector<8xf32>
    %82 = vector.shape_cast %81 : vector<8xf32> to vector<8x1xf32>
    %83 = tpu.reciprocal %82 {approx = true} : vector<8x1xf32> -> vector<8x1xf32>
    %84 = vector.broadcast %83 : vector<8x1xf32> to vector<8x8xf32>
    %85 = arith.mulf %80, %84 : vector<8x8xf32>
    %86 = arith.truncf %85 : vector<8x8xf32> to vector<8x8xbf16>
    %cst_30 = arith.constant dense<0.000000e+00> : vector<8x8xf32>
    %87 = tpu.matmul %86, %74, %cst_30 {dimension_numbers = #tpu.dot_dimension_numbers<[1], [0], [0], [1], [0, 0, 1, 1], [], []>} : vector<8x8xbf16>, vector<8x8xbf16>, vector<8x8xf32> -> vector<8x8xf32>
    %88 = vector.extract_strided_slice %17 {offsets = [0, 24], sizes = [8, 8], strides = [1, 1]} : vector<8x32xf32> to vector<8x8xf32>
    %cst_31 = arith.constant 0.353553385 : f32
    %89 = vector.broadcast %cst_31 : f32 to vector<8x8xf32>
    %90 = arith.mulf %88, %89 : vector<8x8xf32>
    %91 = arith.truncf %90 : vector<8x8xf32> to vector<8x8xbf16>
    %92 = vector.extract_strided_slice %18 {offsets = [0, 24], sizes = [8, 8], strides = [1, 1]} : vector<8x32xf32> to vector<8x8xf32>
    %93 = arith.truncf %92 : vector<8x8xf32> to vector<8x8xbf16>
    %94 = vector.extract_strided_slice %24 {offsets = [0, 24], sizes = [8, 8], strides = [1, 1]} : vector<8x32xf32> to vector<8x8xf32>
    %95 = arith.truncf %94 : vector<8x8xf32> to vector<8x8xbf16>
    %cst_32 = arith.constant dense<0.000000e+00> : vector<8x8xf32>
    %96 = tpu.matmul %91, %93, %cst_32 {dimension_numbers = #tpu.dot_dimension_numbers<[1], [1], [0], [0], [0, 0, 1, 0], [], []>} : vector<8x8xbf16>, vector<8x8xbf16>, vector<8x8xf32> -> vector<8x8xf32>
    %cst_33 = arith.constant dense<0xFF800000> : vector<8xf32>
    %97 = vector.multi_reduction <maximumf>, %96, %cst_33 [1] : vector<8x8xf32> to vector<8xf32>
    %98 = vector.shape_cast %97 : vector<8xf32> to vector<8x1xf32>
    %99 = vector.broadcast %98 : vector<8x1xf32> to vector<8x8xf32>
    %100 = arith.subf %96, %99 : vector<8x8xf32>
    %101 = math.exp %100 : vector<8x8xf32>
    %cst_34 = arith.constant dense<0.000000e+00> : vector<8xf32>
    %102 = vector.multi_reduction <add>, %101, %cst_34 [1] : vector<8x8xf32> to vector<8xf32>
    %103 = vector.shape_cast %102 : vector<8xf32> to vector<8x1xf32>
    %104 = tpu.reciprocal %103 {approx = true} : vector<8x1xf32> -> vector<8x1xf32>
    %105 = vector.broadcast %104 : vector<8x1xf32> to vector<8x8xf32>
    %106 = arith.mulf %101, %105 : vector<8x8xf32>
    %107 = arith.truncf %106 : vector<8x8xf32> to vector<8x8xbf16>
    %cst_35 = arith.constant dense<0.000000e+00> : vector<8x8xf32>
    %108 = tpu.matmul %107, %95, %cst_35 {dimension_numbers = #tpu.dot_dimension_numbers<[1], [0], [0], [1], [0, 0, 1, 1], [], []>} : vector<8x8xbf16>, vector<8x8xbf16>, vector<8x8xf32> -> vector<8x8xf32>
    %109 = tpu.concatenate %45, %66, %87, %108 in 1 : vector<8x8xf32>, vector<8x8xf32>, vector<8x8xf32>, vector<8x8xf32> -> vector<8x32xf32>
    %c0_36 = arith.constant 0 : index
    %c0_37 = arith.constant 0 : index
    %110 = vector.load %arg7[%c0_36, %c0_37] : memref<32x32xbf16, #tpu.memory_space<vmem>>, vector<32x32xbf16>
    %c0_38 = arith.constant 0 : index
    %c0_39 = arith.constant 0 : index
    %111 = vector.load %arg8[%c0_38, %c0_39] : memref<1x32xf32, #tpu.memory_space<vmem>>, vector<1x32xf32>
    %112 = arith.truncf %109 : vector<8x32xf32> to vector<8x32xbf16>
    %cst_40 = arith.constant dense<0.000000e+00> : vector<8x32xf32>
    %113 = tpu.matmul %112, %110, %cst_40 {dimension_numbers = #tpu.dot_dimension_numbers<[1], [0], [0], [1], [0, 0, 1, 1], [], []>} : vector<8x32xbf16>, vector<32x32xbf16>, vector<8x32xf32> -> vector<8x32xf32>
    %114 = vector.broadcast %111 : vector<1x32xf32> to vector<8x32xf32>
    %115 = arith.addf %113, %114 : vector<8x32xf32>
    %116 = arith.addf %1, %115 : vector<8x32xf32>
    %c0_41 = arith.constant 0 : index
    %c0_42 = arith.constant 0 : index
    %117 = vector.load %arg9[%c0_41, %c0_42] : memref<1x32xf32, #tpu.memory_space<vmem>>, vector<1x32xf32>
    %c0_43 = arith.constant 0 : index
    %c0_44 = arith.constant 0 : index
    %118 = vector.load %arg10[%c0_43, %c0_44] : memref<1x32xf32, #tpu.memory_space<vmem>>, vector<1x32xf32>
    %cst_45 = arith.constant dense<0.000000e+00> : vector<8xf32>
    %119 = vector.multi_reduction <add>, %116, %cst_45 [1] : vector<8x32xf32> to vector<8xf32>
    %120 = vector.shape_cast %119 : vector<8xf32> to vector<8x1xf32>
    %cst_46 = arith.constant 3.200000e+01 : f32
    %121 = vector.broadcast %cst_46 : f32 to vector<8x1xf32>
    %122 = arith.divf %120, %121 : vector<8x1xf32>
    %123 = vector.broadcast %122 : vector<8x1xf32> to vector<8x32xf32>
    %124 = arith.subf %116, %123 : vector<8x32xf32>
    %125 = arith.mulf %124, %124 : vector<8x32xf32>
    %cst_47 = arith.constant dense<0.000000e+00> : vector<8xf32>
    %126 = vector.multi_reduction <add>, %125, %cst_47 [1] : vector<8x32xf32> to vector<8xf32>
    %127 = vector.shape_cast %126 : vector<8xf32> to vector<8x1xf32>
    %cst_48 = arith.constant 3.200000e+01 : f32
    %128 = vector.broadcast %cst_48 : f32 to vector<8x1xf32>
    %129 = arith.divf %127, %128 : vector<8x1xf32>
    %130 = vector.broadcast %122 : vector<8x1xf32> to vector<8x32xf32>
    %131 = arith.subf %116, %130 : vector<8x32xf32>
    %cst_49 = arith.constant 9.99999974E-6 : f32
    %132 = vector.broadcast %cst_49 : f32 to vector<8x1xf32>
    %133 = arith.addf %129, %132 : vector<8x1xf32>
    %134 = math.rsqrt %133 : vector<8x1xf32>
    %135 = vector.broadcast %134 : vector<8x1xf32> to vector<8x32xf32>
    %136 = arith.mulf %131, %135 : vector<8x32xf32>
    %137 = vector.broadcast %117 : vector<1x32xf32> to vector<8x32xf32>
    %138 = arith.mulf %136, %137 : vector<8x32xf32>
    %139 = vector.broadcast %118 : vector<1x32xf32> to vector<8x32xf32>
    %140 = arith.addf %138, %139 : vector<8x32xf32>
    %c0_50 = arith.constant 0 : index
    %c0_51 = arith.constant 0 : index
    %141 = vector.load %arg11[%c0_50, %c0_51] : memref<32x96xbf16, #tpu.memory_space<vmem>>, vector<32x96xbf16>
    %c0_52 = arith.constant 0 : index
    %c0_53 = arith.constant 0 : index
    %142 = vector.load %arg12[%c0_52, %c0_53] : memref<1x96xf32, #tpu.memory_space<vmem>>, vector<1x96xf32>
    %143 = arith.addf %140, %3 : vector<8x32xf32>
    %144 = vector.extract_strided_slice %141 {offsets = [0, 0], sizes = [32, 32], strides = [1, 1]} : vector<32x96xbf16> to vector<32x32xbf16>
    %145 = vector.extract_strided_slice %142 {offsets = [0, 0], sizes = [1, 32], strides = [1, 1]} : vector<1x96xf32> to vector<1x32xf32>
    %146 = arith.truncf %143 : vector<8x32xf32> to vector<8x32xbf16>
    %cst_54 = arith.constant dense<0.000000e+00> : vector<8x32xf32>
    %147 = tpu.matmul %146, %144, %cst_54 {dimension_numbers = #tpu.dot_dimension_numbers<[1], [0], [0], [1], [0, 0, 1, 1], [], []>} : vector<8x32xbf16>, vector<32x32xbf16>, vector<8x32xf32> -> vector<8x32xf32>
    %148 = vector.broadcast %145 : vector<1x32xf32> to vector<8x32xf32>
    %149 = arith.addf %147, %148 : vector<8x32xf32>
    %150 = arith.addf %5, %7 : vector<8x32xf32>
    %151 = vector.extract_strided_slice %141 {offsets = [0, 32], sizes = [32, 32], strides = [1, 1]} : vector<32x96xbf16> to vector<32x32xbf16>
    %152 = vector.extract_strided_slice %142 {offsets = [0, 32], sizes = [1, 32], strides = [1, 1]} : vector<1x96xf32> to vector<1x32xf32>
    %153 = arith.truncf %150 : vector<8x32xf32> to vector<8x32xbf16>
    %cst_55 = arith.constant dense<0.000000e+00> : vector<8x32xf32>
    %154 = tpu.matmul %153, %151, %cst_55 {dimension_numbers = #tpu.dot_dimension_numbers<[1], [0], [0], [1], [0, 0, 1, 1], [], []>} : vector<8x32xbf16>, vector<32x32xbf16>, vector<8x32xf32> -> vector<8x32xf32>
    %155 = vector.broadcast %152 : vector<1x32xf32> to vector<8x32xf32>
    %156 = arith.addf %154, %155 : vector<8x32xf32>
    %157 = vector.extract_strided_slice %141 {offsets = [0, 64], sizes = [32, 32], strides = [1, 1]} : vector<32x96xbf16> to vector<32x32xbf16>
    %158 = vector.extract_strided_slice %142 {offsets = [0, 64], sizes = [1, 32], strides = [1, 1]} : vector<1x96xf32> to vector<1x32xf32>
    %159 = arith.truncf %5 : vector<8x32xf32> to vector<8x32xbf16>
    %cst_56 = arith.constant dense<0.000000e+00> : vector<8x32xf32>
    %160 = tpu.matmul %159, %157, %cst_56 {dimension_numbers = #tpu.dot_dimension_numbers<[1], [0], [0], [1], [0, 0, 1, 1], [], []>} : vector<8x32xbf16>, vector<32x32xbf16>, vector<8x32xf32> -> vector<8x32xf32>
    %161 = vector.broadcast %158 : vector<1x32xf32> to vector<8x32xf32>
    %162 = arith.addf %160, %161 : vector<8x32xf32>
    %163 = vector.extract_strided_slice %149 {offsets = [0, 0], sizes = [8, 8], strides = [1, 1]} : vector<8x32xf32> to vector<8x8xf32>
    %cst_57 = arith.constant 0.353553385 : f32
    %164 = vector.broadcast %cst_57 : f32 to vector<8x8xf32>
    %165 = arith.mulf %163, %164 : vector<8x8xf32>
    %166 = arith.truncf %165 : vector<8x8xf32> to vector<8x8xbf16>
    %167 = vector.extract_strided_slice %156 {offsets = [0, 0], sizes = [8, 8], strides = [1, 1]} : vector<8x32xf32> to vector<8x8xf32>
    %168 = arith.truncf %167 : vector<8x8xf32> to vector<8x8xbf16>
    %169 = vector.extract_strided_slice %162 {offsets = [0, 0], sizes = [8, 8], strides = [1, 1]} : vector<8x32xf32> to vector<8x8xf32>
    %170 = arith.truncf %169 : vector<8x8xf32> to vector<8x8xbf16>
    %cst_58 = arith.constant dense<0.000000e+00> : vector<8x8xf32>
    %171 = tpu.matmul %166, %168, %cst_58 {dimension_numbers = #tpu.dot_dimension_numbers<[1], [1], [0], [0], [0, 0, 1, 0], [], []>} : vector<8x8xbf16>, vector<8x8xbf16>, vector<8x8xf32> -> vector<8x8xf32>
    %cst_59 = arith.constant dense<0xFF800000> : vector<8xf32>
    %172 = vector.multi_reduction <maximumf>, %171, %cst_59 [1] : vector<8x8xf32> to vector<8xf32>
    %173 = vector.shape_cast %172 : vector<8xf32> to vector<8x1xf32>
    %174 = vector.broadcast %173 : vector<8x1xf32> to vector<8x8xf32>
    %175 = arith.subf %171, %174 : vector<8x8xf32>
    %176 = math.exp %175 : vector<8x8xf32>
    %cst_60 = arith.constant dense<0.000000e+00> : vector<8xf32>
    %177 = vector.multi_reduction <add>, %176, %cst_60 [1] : vector<8x8xf32> to vector<8xf32>
    %178 = vector.shape_cast %177 : vector<8xf32> to vector<8x1xf32>
    %179 = tpu.reciprocal %178 {approx = true} : vector<8x1xf32> -> vector<8x1xf32>
    %180 = vector.broadcast %179 : vector<8x1xf32> to vector<8x8xf32>
    %181 = arith.mulf %176, %180 : vector<8x8xf32>
    %182 = arith.truncf %181 : vector<8x8xf32> to vector<8x8xbf16>
    %cst_61 = arith.constant dense<0.000000e+00> : vector<8x8xf32>
    %183 = tpu.matmul %182, %170, %cst_61 {dimension_numbers = #tpu.dot_dimension_numbers<[1], [0], [0], [1], [0, 0, 1, 1], [], []>} : vector<8x8xbf16>, vector<8x8xbf16>, vector<8x8xf32> -> vector<8x8xf32>
    %184 = vector.extract_strided_slice %149 {offsets = [0, 8], sizes = [8, 8], strides = [1, 1]} : vector<8x32xf32> to vector<8x8xf32>
    %cst_62 = arith.constant 0.353553385 : f32
    %185 = vector.broadcast %cst_62 : f32 to vector<8x8xf32>
    %186 = arith.mulf %184, %185 : vector<8x8xf32>
    %187 = arith.truncf %186 : vector<8x8xf32> to vector<8x8xbf16>
    %188 = vector.extract_strided_slice %156 {offsets = [0, 8], sizes = [8, 8], strides = [1, 1]} : vector<8x32xf32> to vector<8x8xf32>
    %189 = arith.truncf %188 : vector<8x8xf32> to vector<8x8xbf16>
    %190 = vector.extract_strided_slice %162 {offsets = [0, 8], sizes = [8, 8], strides = [1, 1]} : vector<8x32xf32> to vector<8x8xf32>
    %191 = arith.truncf %190 : vector<8x8xf32> to vector<8x8xbf16>
    %cst_63 = arith.constant dense<0.000000e+00> : vector<8x8xf32>
    %192 = tpu.matmul %187, %189, %cst_63 {dimension_numbers = #tpu.dot_dimension_numbers<[1], [1], [0], [0], [0, 0, 1, 0], [], []>} : vector<8x8xbf16>, vector<8x8xbf16>, vector<8x8xf32> -> vector<8x8xf32>
    %cst_64 = arith.constant dense<0xFF800000> : vector<8xf32>
    %193 = vector.multi_reduction <maximumf>, %192, %cst_64 [1] : vector<8x8xf32> to vector<8xf32>
    %194 = vector.shape_cast %193 : vector<8xf32> to vector<8x1xf32>
    %195 = vector.broadcast %194 : vector<8x1xf32> to vector<8x8xf32>
    %196 = arith.subf %192, %195 : vector<8x8xf32>
    %197 = math.exp %196 : vector<8x8xf32>
    %cst_65 = arith.constant dense<0.000000e+00> : vector<8xf32>
    %198 = vector.multi_reduction <add>, %197, %cst_65 [1] : vector<8x8xf32> to vector<8xf32>
    %199 = vector.shape_cast %198 : vector<8xf32> to vector<8x1xf32>
    %200 = tpu.reciprocal %199 {approx = true} : vector<8x1xf32> -> vector<8x1xf32>
    %201 = vector.broadcast %200 : vector<8x1xf32> to vector<8x8xf32>
    %202 = arith.mulf %197, %201 : vector<8x8xf32>
    %203 = arith.truncf %202 : vector<8x8xf32> to vector<8x8xbf16>
    %cst_66 = arith.constant dense<0.000000e+00> : vector<8x8xf32>
    %204 = tpu.matmul %203, %191, %cst_66 {dimension_numbers = #tpu.dot_dimension_numbers<[1], [0], [0], [1], [0, 0, 1, 1], [], []>} : vector<8x8xbf16>, vector<8x8xbf16>, vector<8x8xf32> -> vector<8x8xf32>
    %205 = vector.extract_strided_slice %149 {offsets = [0, 16], sizes = [8, 8], strides = [1, 1]} : vector<8x32xf32> to vector<8x8xf32>
    %cst_67 = arith.constant 0.353553385 : f32
    %206 = vector.broadcast %cst_67 : f32 to vector<8x8xf32>
    %207 = arith.mulf %205, %206 : vector<8x8xf32>
    %208 = arith.truncf %207 : vector<8x8xf32> to vector<8x8xbf16>
    %209 = vector.extract_strided_slice %156 {offsets = [0, 16], sizes = [8, 8], strides = [1, 1]} : vector<8x32xf32> to vector<8x8xf32>
    %210 = arith.truncf %209 : vector<8x8xf32> to vector<8x8xbf16>
    %211 = vector.extract_strided_slice %162 {offsets = [0, 16], sizes = [8, 8], strides = [1, 1]} : vector<8x32xf32> to vector<8x8xf32>
    %212 = arith.truncf %211 : vector<8x8xf32> to vector<8x8xbf16>
    %cst_68 = arith.constant dense<0.000000e+00> : vector<8x8xf32>
    %213 = tpu.matmul %208, %210, %cst_68 {dimension_numbers = #tpu.dot_dimension_numbers<[1], [1], [0], [0], [0, 0, 1, 0], [], []>} : vector<8x8xbf16>, vector<8x8xbf16>, vector<8x8xf32> -> vector<8x8xf32>
    %cst_69 = arith.constant dense<0xFF800000> : vector<8xf32>
    %214 = vector.multi_reduction <maximumf>, %213, %cst_69 [1] : vector<8x8xf32> to vector<8xf32>
    %215 = vector.shape_cast %214 : vector<8xf32> to vector<8x1xf32>
    %216 = vector.broadcast %215 : vector<8x1xf32> to vector<8x8xf32>
    %217 = arith.subf %213, %216 : vector<8x8xf32>
    %218 = math.exp %217 : vector<8x8xf32>
    %cst_70 = arith.constant dense<0.000000e+00> : vector<8xf32>
    %219 = vector.multi_reduction <add>, %218, %cst_70 [1] : vector<8x8xf32> to vector<8xf32>
    %220 = vector.shape_cast %219 : vector<8xf32> to vector<8x1xf32>
    %221 = tpu.reciprocal %220 {approx = true} : vector<8x1xf32> -> vector<8x1xf32>
    %222 = vector.broadcast %221 : vector<8x1xf32> to vector<8x8xf32>
    %223 = arith.mulf %218, %222 : vector<8x8xf32>
    %224 = arith.truncf %223 : vector<8x8xf32> to vector<8x8xbf16>
    %cst_71 = arith.constant dense<0.000000e+00> : vector<8x8xf32>
    %225 = tpu.matmul %224, %212, %cst_71 {dimension_numbers = #tpu.dot_dimension_numbers<[1], [0], [0], [1], [0, 0, 1, 1], [], []>} : vector<8x8xbf16>, vector<8x8xbf16>, vector<8x8xf32> -> vector<8x8xf32>
    %226 = vector.extract_strided_slice %149 {offsets = [0, 24], sizes = [8, 8], strides = [1, 1]} : vector<8x32xf32> to vector<8x8xf32>
    %cst_72 = arith.constant 0.353553385 : f32
    %227 = vector.broadcast %cst_72 : f32 to vector<8x8xf32>
    %228 = arith.mulf %226, %227 : vector<8x8xf32>
    %229 = arith.truncf %228 : vector<8x8xf32> to vector<8x8xbf16>
    %230 = vector.extract_strided_slice %156 {offsets = [0, 24], sizes = [8, 8], strides = [1, 1]} : vector<8x32xf32> to vector<8x8xf32>
    %231 = arith.truncf %230 : vector<8x8xf32> to vector<8x8xbf16>
    %232 = vector.extract_strided_slice %162 {offsets = [0, 24], sizes = [8, 8], strides = [1, 1]} : vector<8x32xf32> to vector<8x8xf32>
    %233 = arith.truncf %232 : vector<8x8xf32> to vector<8x8xbf16>
    %cst_73 = arith.constant dense<0.000000e+00> : vector<8x8xf32>
    %234 = tpu.matmul %229, %231, %cst_73 {dimension_numbers = #tpu.dot_dimension_numbers<[1], [1], [0], [0], [0, 0, 1, 0], [], []>} : vector<8x8xbf16>, vector<8x8xbf16>, vector<8x8xf32> -> vector<8x8xf32>
    %cst_74 = arith.constant dense<0xFF800000> : vector<8xf32>
    %235 = vector.multi_reduction <maximumf>, %234, %cst_74 [1] : vector<8x8xf32> to vector<8xf32>
    %236 = vector.shape_cast %235 : vector<8xf32> to vector<8x1xf32>
    %237 = vector.broadcast %236 : vector<8x1xf32> to vector<8x8xf32>
    %238 = arith.subf %234, %237 : vector<8x8xf32>
    %239 = math.exp %238 : vector<8x8xf32>
    %cst_75 = arith.constant dense<0.000000e+00> : vector<8xf32>
    %240 = vector.multi_reduction <add>, %239, %cst_75 [1] : vector<8x8xf32> to vector<8xf32>
    %241 = vector.shape_cast %240 : vector<8xf32> to vector<8x1xf32>
    %242 = tpu.reciprocal %241 {approx = true} : vector<8x1xf32> -> vector<8x1xf32>
    %243 = vector.broadcast %242 : vector<8x1xf32> to vector<8x8xf32>
    %244 = arith.mulf %239, %243 : vector<8x8xf32>
    %245 = arith.truncf %244 : vector<8x8xf32> to vector<8x8xbf16>
    %cst_76 = arith.constant dense<0.000000e+00> : vector<8x8xf32>
    %246 = tpu.matmul %245, %233, %cst_76 {dimension_numbers = #tpu.dot_dimension_numbers<[1], [0], [0], [1], [0, 0, 1, 1], [], []>} : vector<8x8xbf16>, vector<8x8xbf16>, vector<8x8xf32> -> vector<8x8xf32>
    %247 = tpu.concatenate %183, %204, %225, %246 in 1 : vector<8x8xf32>, vector<8x8xf32>, vector<8x8xf32>, vector<8x8xf32> -> vector<8x32xf32>
    %c0_77 = arith.constant 0 : index
    %c0_78 = arith.constant 0 : index
    %248 = vector.load %arg13[%c0_77, %c0_78] : memref<32x32xbf16, #tpu.memory_space<vmem>>, vector<32x32xbf16>
    %c0_79 = arith.constant 0 : index
    %c0_80 = arith.constant 0 : index
    %249 = vector.load %arg14[%c0_79, %c0_80] : memref<1x32xf32, #tpu.memory_space<vmem>>, vector<1x32xf32>
    %250 = arith.truncf %247 : vector<8x32xf32> to vector<8x32xbf16>
    %cst_81 = arith.constant dense<0.000000e+00> : vector<8x32xf32>
    %251 = tpu.matmul %250, %248, %cst_81 {dimension_numbers = #tpu.dot_dimension_numbers<[1], [0], [0], [1], [0, 0, 1, 1], [], []>} : vector<8x32xbf16>, vector<32x32xbf16>, vector<8x32xf32> -> vector<8x32xf32>
    %252 = vector.broadcast %249 : vector<1x32xf32> to vector<8x32xf32>
    %253 = arith.addf %251, %252 : vector<8x32xf32>
    %254 = arith.addf %140, %253 : vector<8x32xf32>
    %c0_82 = arith.constant 0 : index
    %c0_83 = arith.constant 0 : index
    %255 = vector.load %arg15[%c0_82, %c0_83] : memref<1x32xf32, #tpu.memory_space<vmem>>, vector<1x32xf32>
    %c0_84 = arith.constant 0 : index
    %c0_85 = arith.constant 0 : index
    %256 = vector.load %arg16[%c0_84, %c0_85] : memref<1x32xf32, #tpu.memory_space<vmem>>, vector<1x32xf32>
    %cst_86 = arith.constant dense<0.000000e+00> : vector<8xf32>
    %257 = vector.multi_reduction <add>, %254, %cst_86 [1] : vector<8x32xf32> to vector<8xf32>
    %258 = vector.shape_cast %257 : vector<8xf32> to vector<8x1xf32>
    %cst_87 = arith.constant 3.200000e+01 : f32
    %259 = vector.broadcast %cst_87 : f32 to vector<8x1xf32>
    %260 = arith.divf %258, %259 : vector<8x1xf32>
    %261 = vector.broadcast %260 : vector<8x1xf32> to vector<8x32xf32>
    %262 = arith.subf %254, %261 : vector<8x32xf32>
    %263 = arith.mulf %262, %262 : vector<8x32xf32>
    %cst_88 = arith.constant dense<0.000000e+00> : vector<8xf32>
    %264 = vector.multi_reduction <add>, %263, %cst_88 [1] : vector<8x32xf32> to vector<8xf32>
    %265 = vector.shape_cast %264 : vector<8xf32> to vector<8x1xf32>
    %cst_89 = arith.constant 3.200000e+01 : f32
    %266 = vector.broadcast %cst_89 : f32 to vector<8x1xf32>
    %267 = arith.divf %265, %266 : vector<8x1xf32>
    %268 = vector.broadcast %260 : vector<8x1xf32> to vector<8x32xf32>
    %269 = arith.subf %254, %268 : vector<8x32xf32>
    %cst_90 = arith.constant 9.99999974E-6 : f32
    %270 = vector.broadcast %cst_90 : f32 to vector<8x1xf32>
    %271 = arith.addf %267, %270 : vector<8x1xf32>
    %272 = math.rsqrt %271 : vector<8x1xf32>
    %273 = vector.broadcast %272 : vector<8x1xf32> to vector<8x32xf32>
    %274 = arith.mulf %269, %273 : vector<8x32xf32>
    %275 = vector.broadcast %255 : vector<1x32xf32> to vector<8x32xf32>
    %276 = arith.mulf %274, %275 : vector<8x32xf32>
    %277 = vector.broadcast %256 : vector<1x32xf32> to vector<8x32xf32>
    %278 = arith.addf %276, %277 : vector<8x32xf32>
    %c0_91 = arith.constant 0 : index
    %c0_92 = arith.constant 0 : index
    %279 = vector.load %arg17[%c0_91, %c0_92] : memref<32x64xbf16, #tpu.memory_space<vmem>>, vector<32x64xbf16>
    %c0_93 = arith.constant 0 : index
    %c0_94 = arith.constant 0 : index
    %280 = vector.load %arg18[%c0_93, %c0_94] : memref<1x64xf32, #tpu.memory_space<vmem>>, vector<1x64xf32>
    %281 = arith.truncf %278 : vector<8x32xf32> to vector<8x32xbf16>
    %cst_95 = arith.constant dense<0.000000e+00> : vector<8x64xf32>
    %282 = tpu.matmul %281, %279, %cst_95 {dimension_numbers = #tpu.dot_dimension_numbers<[1], [0], [0], [1], [0, 0, 1, 1], [], []>} : vector<8x32xbf16>, vector<32x64xbf16>, vector<8x64xf32> -> vector<8x64xf32>
    %283 = vector.broadcast %280 : vector<1x64xf32> to vector<8x64xf32>
    %284 = arith.addf %282, %283 : vector<8x64xf32>
    %cst_96 = arith.constant 0.000000e+00 : f32
    %285 = vector.broadcast %cst_96 : f32 to vector<8x64xf32>
    %286 = arith.maximumf %284, %285 : vector<8x64xf32>
    %c0_97 = arith.constant 0 : index
    %c0_98 = arith.constant 0 : index
    %287 = vector.load %arg19[%c0_97, %c0_98] : memref<64x32xbf16, #tpu.memory_space<vmem>>, vector<64x32xbf16>
    %c0_99 = arith.constant 0 : index
    %c0_100 = arith.constant 0 : index
    %288 = vector.load %arg20[%c0_99, %c0_100] : memref<1x32xf32, #tpu.memory_space<vmem>>, vector<1x32xf32>
    %289 = arith.truncf %286 : vector<8x64xf32> to vector<8x64xbf16>
    %cst_101 = arith.constant dense<0.000000e+00> : vector<8x32xf32>
    %290 = tpu.matmul %289, %287, %cst_101 {dimension_numbers = #tpu.dot_dimension_numbers<[1], [0], [0], [1], [0, 0, 1, 1], [], []>} : vector<8x64xbf16>, vector<64x32xbf16>, vector<8x32xf32> -> vector<8x32xf32>
    %291 = vector.broadcast %288 : vector<1x32xf32> to vector<8x32xf32>
    %292 = arith.addf %290, %291 : vector<8x32xf32>
    %293 = arith.addf %278, %292 : vector<8x32xf32>
    %c0_102 = arith.constant 0 : index
    %c0_103 = arith.constant 0 : index
    %294 = vector.load %arg21[%c0_102, %c0_103] : memref<1x32xf32, #tpu.memory_space<vmem>>, vector<1x32xf32>
    %c0_104 = arith.constant 0 : index
    %c0_105 = arith.constant 0 : index
    %295 = vector.load %arg22[%c0_104, %c0_105] : memref<1x32xf32, #tpu.memory_space<vmem>>, vector<1x32xf32>
    %cst_106 = arith.constant dense<0.000000e+00> : vector<8xf32>
    %296 = vector.multi_reduction <add>, %293, %cst_106 [1] : vector<8x32xf32> to vector<8xf32>
    %297 = vector.shape_cast %296 : vector<8xf32> to vector<8x1xf32>
    %cst_107 = arith.constant 3.200000e+01 : f32
    %298 = vector.broadcast %cst_107 : f32 to vector<8x1xf32>
    %299 = arith.divf %297, %298 : vector<8x1xf32>
    %300 = vector.broadcast %299 : vector<8x1xf32> to vector<8x32xf32>
    %301 = arith.subf %293, %300 : vector<8x32xf32>
    %302 = arith.mulf %301, %301 : vector<8x32xf32>
    %cst_108 = arith.constant dense<0.000000e+00> : vector<8xf32>
    %303 = vector.multi_reduction <add>, %302, %cst_108 [1] : vector<8x32xf32> to vector<8xf32>
    %304 = vector.shape_cast %303 : vector<8xf32> to vector<8x1xf32>
    %cst_109 = arith.constant 3.200000e+01 : f32
    %305 = vector.broadcast %cst_109 : f32 to vector<8x1xf32>
    %306 = arith.divf %304, %305 : vector<8x1xf32>
    %307 = vector.broadcast %299 : vector<8x1xf32> to vector<8x32xf32>
    %308 = arith.subf %293, %307 : vector<8x32xf32>
    %cst_110 = arith.constant 9.99999974E-6 : f32
    %309 = vector.broadcast %cst_110 : f32 to vector<8x1xf32>
    %310 = arith.addf %306, %309 : vector<8x1xf32>
    %311 = math.rsqrt %310 : vector<8x1xf32>
    %312 = vector.broadcast %311 : vector<8x1xf32> to vector<8x32xf32>
    %313 = arith.mulf %308, %312 : vector<8x32xf32>
    %314 = vector.broadcast %294 : vector<1x32xf32> to vector<8x32xf32>
    %315 = arith.mulf %313, %314 : vector<8x32xf32>
    %316 = vector.broadcast %295 : vector<1x32xf32> to vector<8x32xf32>
    %317 = arith.addf %315, %316 : vector<8x32xf32>
    %c0_111 = arith.constant 0 : index
    %c0_112 = arith.constant 0 : index
    %c0_113 = arith.constant 0 : index
    %318 = vector.load %arg23[%c0_111, %c0_112, %c0_113] : memref<1x8x32xf32, #tpu.memory_space<vmem>>, vector<1x8x32xf32>
    %319 = vector.shape_cast %318 : vector<1x8x32xf32> to vector<8x32xf32>
    %320 = vector.shape_cast %317 : vector<8x32xf32> to vector<1x8x32xf32>
    tpu.vector_store %arg23[%c0_111, %c0_112, %c0_113], %320 {strides = array<i32>} : memref<1x8x32xf32, #tpu.memory_space<vmem>>, vector<1x8x32xf32>,
    return
  }
  func.func @transform_0(%arg0: i32) -> (i32, i32, i32) {
    %c0_i32 = arith.constant 0 : i32
    %c0_i32_0 = arith.constant 0 : i32
    %c0_i32_1 = arith.constant 0 : i32
    return %arg0, %c0_i32, %c0_i32_0 : i32, i32, i32
  }
  func.func @transform_1(%arg0: i32) -> (i32, i32, i32) {
    %c0_i32 = arith.constant 0 : i32
    %c0_i32_0 = arith.constant 0 : i32
    %c0_i32_1 = arith.constant 0 : i32
    return %arg0, %c0_i32, %c0_i32_0 : i32, i32, i32
  }
  func.func @transform_2(%arg0: i32) -> (i32, i32, i32) {
    %c0_i32 = arith.constant 0 : i32
    %c0_i32_0 = arith.constant 0 : i32
    %c0_i32_1 = arith.constant 0 : i32
    return %arg0, %c0_i32, %c0_i32_0 : i32, i32, i32
  }
  func.func @transform_3(%arg0: i32) -> (i32, i32, i32) {
    %c0_i32 = arith.constant 0 : i32
    %c0_i32_0 = arith.constant 0 : i32
    %c0_i32_1 = arith.constant 0 : i32
    return %arg0, %c0_i32, %c0_i32_0 : i32, i32, i32
  }
  func.func @transform_4(%arg0: i32) -> (i32, i32) {
    %c0_i32 = arith.constant 0 : i32
    %c0_i32_0 = arith.constant 0 : i32
    %c0_i32_1 = arith.constant 0 : i32
    return %c0_i32, %c0_i32_0 : i32, i32
  }
  func.func @transform_5(%arg0: i32) -> (i32, i32) {
    %c0_i32 = arith.constant 0 : i32
    %c0_i32_0 = arith.constant 0 : i32
    %c0_i32_1 = arith.constant 0 : i32
    return %c0_i32, %c0_i32_0 : i32, i32
  }
  func.func @transform_6(%arg0: i32) -> (i32, i32) {
    %c0_i32 = arith.constant 0 : i32
    %c0_i32_0 = arith.constant 0 : i32
    %c0_i32_1 = arith.constant 0 : i32
    return %c0_i32, %c0_i32_0 : i32, i32
  }
  func.func @transform_7(%arg0: i32) -> (i32, i32) {
    %c0_i32 = arith.constant 0 : i32
    %c0_i32_0 = arith.constant 0 : i32
    %c0_i32_1 = arith.constant 0 : i32
    return %c0_i32, %c0_i32_0 : i32, i32
  }
  func.func @transform_8(%arg0: i32) -> (i32, i32) {
    %c0_i32 = arith.constant 0 : i32
    %c0_i32_0 = arith.constant 0 : i32
    %c0_i32_1 = arith.constant 0 : i32
    return %c0_i32, %c0_i32_0 : i32, i32
  }
  func.func @transform_9(%arg0: i32) -> (i32, i32) {
    %c0_i32 = arith.constant 0 : i32
    %c0_i32_0 = arith.constant 0 : i32
    %c0_i32_1 = arith.constant 0 : i32
    return %c0_i32, %c0_i32_0 : i32, i32
  }
  func.func @transform_10(%arg0: i32) -> (i32, i32) {
    %c0_i32 = arith.constant 0 : i32
    %c0_i32_0 = arith.constant 0 : i32
    %c0_i32_1 = arith.constant 0 : i32
    return %c0_i32, %c0_i32_0 : i32, i32
  }
  func.func @transform_11(%arg0: i32) -> (i32, i32) {
    %c0_i32 = arith.constant 0 : i32
    %c0_i32_0 = arith.constant 0 : i32
    %c0_i32_1 = arith.constant 0 : i32
    return %c0_i32, %c0_i32_0 : i32, i32
  }
  func.func @transform_12(%arg0: i32) -> (i32, i32) {
    %c0_i32 = arith.constant 0 : i32
    %c0_i32_0 = arith.constant 0 : i32
    %c0_i32_1 = arith.constant 0 : i32
    return %c0_i32, %c0_i32_0 : i32, i32
  }
  func.func @transform_13(%arg0: i32) -> (i32, i32) {
    %c0_i32 = arith.constant 0 : i32
    %c0_i32_0 = arith.constant 0 : i32
    %c0_i32_1 = arith.constant 0 : i32
    return %c0_i32, %c0_i32_0 : i32, i32
  }
  func.func @transform_14(%arg0: i32) -> (i32, i32) {
    %c0_i32 = arith.constant 0 : i32
    %c0_i32_0 = arith.constant 0 : i32
    %c0_i32_1 = arith.constant 0 : i32
    return %c0_i32, %c0_i32_0 : i32, i32
  }
  func.func @transform_15(%arg0: i32) -> (i32, i32) {
    %c0_i32 = arith.constant 0 : i32
    %c0_i32_0 = arith.constant 0 : i32
    %c0_i32_1 = arith.constant 0 : i32
    return %c0_i32, %c0_i32_0 : i32, i32
  }
  func.func @transform_16(%arg0: i32) -> (i32, i32) {
    %c0_i32 = arith.constant 0 : i32
    %c0_i32_0 = arith.constant 0 : i32
    %c0_i32_1 = arith.constant 0 : i32
    return %c0_i32, %c0_i32_0 : i32, i32
  }
  func.func @transform_17(%arg0: i32) -> (i32, i32) {
    %c0_i32 = arith.constant 0 : i32
    %c0_i32_0 = arith.constant 0 : i32
    %c0_i32_1 = arith.constant 0 : i32
    return %c0_i32, %c0_i32_0 : i32, i32
  }
  func.func @transform_18(%arg0: i32) -> (i32, i32) {
    %c0_i32 = arith.constant 0 : i32
    %c0_i32_0 = arith.constant 0 : i32
    %c0_i32_1 = arith.constant 0 : i32
    return %c0_i32, %c0_i32_0 : i32, i32
  }
  func.func @transform_19(%arg0: i32) -> (i32, i32) {
    %c0_i32 = arith.constant 0 : i32
    %c0_i32_0 = arith.constant 0 : i32
    %c0_i32_1 = arith.constant 0 : i32
    return %c0_i32, %c0_i32_0 : i32, i32
  }
  func.func @transform_20(%arg0: i32) -> (i32, i32) {
    %c0_i32 = arith.constant 0 : i32
    %c0_i32_0 = arith.constant 0 : i32
    %c0_i32_1 = arith.constant 0 : i32
    return %c0_i32, %c0_i32_0 : i32, i32
  }
  func.func @transform_21(%arg0: i32) -> (i32, i32) {
    %c0_i32 = arith.constant 0 : i32
    %c0_i32_0 = arith.constant 0 : i32
    %c0_i32_1 = arith.constant 0 : i32
    return %c0_i32, %c0_i32_0 : i32, i32
  }
  func.func @transform_22(%arg0: i32) -> (i32, i32, i32) {
    %c0_i32 = arith.constant 0 : i32
    %c0_i32_0 = arith.constant 0 : i32
    %c0_i32_1 = arith.constant 0 : i32
    return %arg0, %c0_i32, %c0_i32_0 : i32, i32, i32
  }
}

</mosaic_0001>

<llo_original>
// kernel: transformer_decoder_layer.1
$region0: #{transformer_decoder_layer.1}
  #allocation0 [shape = 'u32[]', space=smem, size = 0x4, offset = 0x4, fixed_abs, tag = 'smem constant byte address 0x4 - core index']
  #allocation1 [shape = 'u32[72,128]{1,0:T(1,128)}', space=vmem, size = 0x9000, scoped, tag = 'internal scratch']
  %s0 = inlined_call_operand.vmem [shape: f32[2,8,32], index: 0, kind: input, shape index: {}]
  %s1 = inlined_call_operand.vmem [shape: f32[2,8,32], index: 1, kind: input, shape index: {}]
  %s2 = inlined_call_operand.vmem [shape: f32[2,8,32], index: 2, kind: input, shape index: {}]
  %s3 = inlined_call_operand.vmem [shape: f32[2,8,32], index: 3, kind: input, shape index: {}]
  %s4 = inlined_call_operand.vmem [shape: bf16[32,96], index: 4, kind: input, shape index: {}]
  %s5 = inlined_call_operand.vmem [shape: f32[1,96], index: 5, kind: input, shape index: {}]
  %s6 = inlined_call_operand.vmem [shape: bf16[32,32], index: 6, kind: input, shape index: {}]
  %s7 = inlined_call_operand.vmem [shape: f32[1,32], index: 7, kind: input, shape index: {}]
  %s8 = inlined_call_operand.vmem [shape: f32[1,32], index: 8, kind: input, shape index: {}]
  %s9 = inlined_call_operand.vmem [shape: f32[1,32], index: 9, kind: input, shape index: {}]
  %s10 = inlined_call_operand.vmem [shape: bf16[32,96], index: 10, kind: input, shape index: {}]
  %s11 = inlined_call_operand.vmem [shape: f32[1,96], index: 11, kind: input, shape index: {}]
  %s12 = inlined_call_operand.vmem [shape: bf16[32,32], index: 12, kind: input, shape index: {}]
  %s13 = inlined_call_operand.vmem [shape: f32[1,32], index: 13, kind: input, shape index: {}]
  %s14 = inlined_call_operand.vmem [shape: f32[1,32], index: 14, kind: input, shape index: {}]
  %s15 = inlined_call_operand.vmem [shape: f32[1,32], index: 15, kind: input, shape index: {}]
  %s16 = inlined_call_operand.vmem [shape: bf16[32,64], index: 16, kind: input, shape index: {}]
  %s17 = inlined_call_operand.vmem [shape: f32[1,64], index: 17, kind: input, shape index: {}]
  %s18 = inlined_call_operand.vmem [shape: bf16[64,32], index: 18, kind: input, shape index: {}]
  %s19 = inlined_call_operand.vmem [shape: f32[1,32], index: 19, kind: input, shape index: {}]
  %s20 = inlined_call_operand.vmem [shape: f32[1,32], index: 20, kind: input, shape index: {}]
  %s21 = inlined_call_operand.vmem [shape: f32[1,32], index: 21, kind: input, shape index: {}]
  %s22 = inlined_call_operand.vmem [shape: f32[2,8,32], index: 22, kind: output, shape index: {}]
  %s23 = sld [smem:[#allocation0]]
  $region121: #{transformer_decoder_layer.1} parent=0
    _
  %s25 = ssub.s32 1, %s23
  %s26 = scalar_select 0, %s25, %s23
  loop: start=0, step=1, limit=4
  $region2: #{transformer_decoder_layer.1} parent=0 // loop_pre_header
    _
  $region3: #{transformer_decoder_layer.1} parent=0 // loop_header
    %s28 = sphi 0, %s32
    %p29 = scmp.ge.s32.totalorder %s28, 4
    %s38 = sphi 0, %s40
    %s41 = sphi 0, %s38
    %s42 = sphi 0, %s41
    %s58 = sphi 0, %s42
    %s64 = sphi 0, %s66
    %s67 = sphi 0, %s64
    %s68 = sphi 0, %s67
    %s84 = sphi 0, %s68
    %s90 = sphi 0, %s92
    %s93 = sphi 0, %s90
    %s94 = sphi 0, %s93
    %s110 = sphi 0, %s94
    %s116 = sphi 0, %s118
    %s119 = sphi 0, %s116
    %s120 = sphi 0, %s119
    %s136 = sphi 0, %s120
    %s140 = sphi 0, %s140
    %s142 = sphi 0, %s140
    %s143 = sphi 0, %s142
    %s157 = sphi 0, %s143
    %s161 = sphi 0, %s161
    %s163 = sphi 0, %s161
    %s164 = sphi 0, %s163
    %s178 = sphi 0, %s164
    %s182 = sphi 0, %s182
    %s184 = sphi 0, %s182
    %s185 = sphi 0, %s184
    %s199 = sphi 0, %s185
    %s203 = sphi 0, %s203
    %s205 = sphi 0, %s203
    %s206 = sphi 0, %s205
    %s220 = sphi 0, %s206
    %s224 = sphi 0, %s224
    %s226 = sphi 0, %s224
    %s227 = sphi 0, %s226
    %s241 = sphi 0, %s227
    %s245 = sphi 0, %s245
    %s247 = sphi 0, %s245
    %s248 = sphi 0, %s247
    %s262 = sphi 0, %s248
    %s266 = sphi 0, %s266
    %s268 = sphi 0, %s266
    %s269 = sphi 0, %s268
    %s283 = sphi 0, %s269
    %s287 = sphi 0, %s287
    %s289 = sphi 0, %s287
    %s290 = sphi 0, %s289
    %s304 = sphi 0, %s290
    %s308 = sphi 0, %s308
    %s310 = sphi 0, %s308
    %s311 = sphi 0, %s310
    %s325 = sphi 0, %s311
    %s329 = sphi 0, %s329
    %s331 = sphi 0, %s329
    %s332 = sphi 0, %s331
    %s346 = sphi 0, %s332
    %s350 = sphi 0, %s350
    %s352 = sphi 0, %s350
    %s353 = sphi 0, %s352
    %s367 = sphi 0, %s353
    %s371 = sphi 0, %s371
    %s373 = sphi 0, %s371
    %s374 = sphi 0, %s373
    %s388 = sphi 0, %s374
    %s392 = sphi 0, %s392
    %s394 = sphi 0, %s392
    %s395 = sphi 0, %s394
    %s409 = sphi 0, %s395
    %s413 = sphi 0, %s413
    %s415 = sphi 0, %s413
    %s416 = sphi 0, %s415
    %s430 = sphi 0, %s416
    %s434 = sphi 0, %s434
    %s436 = sphi 0, %s434
    %s437 = sphi 0, %s436
    %s451 = sphi 0, %s437
    %s455 = sphi 0, %s455
    %s457 = sphi 0, %s455
    %s458 = sphi 0, %s457
    %s472 = sphi 0, %s458
    %s476 = sphi 0, %s476
    %s478 = sphi 0, %s476
    %s479 = sphi 0, %s478
    %s493 = sphi 0, %s479
    %s497 = sphi 0, %s497
    %s499 = sphi 0, %s497
    %s500 = sphi 0, %s499
    %s514 = sphi 0, %s500
    %s520 = sphi 0, %s522
    %s523 = sphi 0, %s520
    %s524 = sphi 0, %s523
    %s540 = sphi 0, %s524
  $region4: #{transformer_decoder_layer.1} parent=0 // loop_header_branch
    %31 = sbr.rel (%p29) target = $region8
  $region5: #{transformer_decoder_layer.1} parent=0 // loop_body
    %s33 = ssub.s32 %s28, 1
    %s34 = ssub.s32 %s28, 2
    %s35 = sadd.s32 %s28, 1
    %s36 = ssub.s32 %s28, %s35
    %p37 = scmp.eq.s32.totalorder %s36, 0
    %s39 = sadd.s32 %s38, 1
    %s40 = scalar_select %p37, %s38, %s39
    %p43 = pneg %p37
    %p44 = scmp.eq.s32.totalorder %s28, 1
    %p45 = por %p43, %p44
    %p46 = scmp.ne.s32.totalorder %s38, %s41
    %p47 = scmp.eq.s32.totalorder %s28, 0
    %p48 = por %p46, %p47
    %p49 = scmp.ne.s32.totalorder %s38, %s41
    %p50 = scmp.eq.s32.totalorder %s33, 1
    %p51 = por %p49, %p50
    %p52 = scmp.ne.s32.totalorder %s41, %s42
    %p53 = scmp.eq.s32.totalorder %s33, 0
    %p54 = por %p52, %p53
    %p55 = scmp.ne.s32.totalorder %s41, %s42
    %p56 = scmp.eq.s32.totalorder %s34, 1
    %p57 = por %p55, %p56
    %p59 = scmp.ne.s32.totalorder %s42, %s58
    %p60 = scmp.eq.s32.totalorder %s34, 0
    %p61 = por %p59, %p60
    %s62 = ssub.s32 %s28, %s35
    %p63 = scmp.eq.s32.totalorder %s62, 0
    %s65 = sadd.s32 %s64, 1
    %s66 = scalar_select %p63, %s64, %s65
    %p69 = pneg %p63
    %p70 = scmp.eq.s32.totalorder %s28, 1
    %p71 = por %p69, %p70
    %p72 = scmp.ne.s32.totalorder %s64, %s67
    %p73 = scmp.eq.s32.totalorder %s28, 0
    %p74 = por %p72, %p73
    %p75 = scmp.ne.s32.totalorder %s64, %s67
    %p76 = scmp.eq.s32.totalorder %s33, 1
    %p77 = por %p75, %p76
    %p78 = scmp.ne.s32.totalorder %s67, %s68
    %p79 = scmp.eq.s32.totalorder %s33, 0
    %p80 = por %p78, %p79
    %p81 = scmp.ne.s32.totalorder %s67, %s68
    %p82 = scmp.eq.s32.totalorder %s34, 1
    %p83 = por %p81, %p82
    %p85 = scmp.ne.s32.totalorder %s68, %s84
    %p86 = scmp.eq.s32.totalorder %s34, 0
    %p87 = por %p85, %p86
    %s88 = ssub.s32 %s28, %s35
    %p89 = scmp.eq.s32.totalorder %s88, 0
    %s91 = sadd.s32 %s90, 1
    %s92 = scalar_select %p89, %s90, %s91
    %p95 = pneg %p89
    %p96 = scmp.eq.s32.totalorder %s28, 1
    %p97 = por %p95, %p96
    %p98 = scmp.ne.s32.totalorder %s90, %s93
    %p99 = scmp.eq.s32.totalorder %s28, 0
    %p100 = por %p98, %p99
    %p101 = scmp.ne.s32.totalorder %s90, %s93
    %p102 = scmp.eq.s32.totalorder %s33, 1
    %p103 = por %p101, %p102
    %p104 = scmp.ne.s32.totalorder %s93, %s94
    %p105 = scmp.eq.s32.totalorder %s33, 0
    %p106 = por %p104, %p105
    %p107 = scmp.ne.s32.totalorder %s93, %s94
    %p108 = scmp.eq.s32.totalorder %s34, 1
    %p109 = por %p107, %p108
    %p111 = scmp.ne.s32.totalorder %s94, %s110
    %p112 = scmp.eq.s32.totalorder %s34, 0
    %p113 = por %p111, %p112
    %s114 = ssub.s32 %s28, %s35
    %p115 = scmp.eq.s32.totalorder %s114, 0
    %s117 = sadd.s32 %s116, 1
    %s118 = scalar_select %p115, %s116, %s117
    %p121 = pneg %p115
    %p122 = scmp.eq.s32.totalorder %s28, 1
    %p123 = por %p121, %p122
    %p124 = scmp.ne.s32.totalorder %s116, %s119
    %p125 = scmp.eq.s32.totalorder %s28, 0
    %p126 = por %p124, %p125
    %p127 = scmp.ne.s32.totalorder %s116, %s119
    %p128 = scmp.eq.s32.totalorder %s33, 1
    %p129 = por %p127, %p128
    %p130 = scmp.ne.s32.totalorder %s119, %s120
    %p131 = scmp.eq.s32.totalorder %s33, 0
    %p132 = por %p130, %p131
    %p133 = scmp.ne.s32.totalorder %s119, %s120
    %p134 = scmp.eq.s32.totalorder %s34, 1
    %p135 = por %p133, %p134
    %p137 = scmp.ne.s32.totalorder %s120, %s136
    %p138 = scmp.eq.s32.totalorder %s34, 0
    %p139 = por %p137, %p138
    %s141 = sadd.s32 %s140, 1
    %p144 = scmp.eq.s32.totalorder %s28, 1
    %p145 = scmp.ne.s32.totalorder %s140, %s142
    %p146 = scmp.eq.s32.totalorder %s28, 0
    %p147 = por %p145, %p146
    %p148 = scmp.ne.s32.totalorder %s140, %s142
    %p149 = scmp.eq.s32.totalorder %s33, 1
    %p150 = por %p148, %p149
    %p151 = scmp.ne.s32.totalorder %s142, %s143
    %p152 = scmp.eq.s32.totalorder %s33, 0
    %p153 = por %p151, %p152
    %p154 = scmp.ne.s32.totalorder %s142, %s143
    %p155 = scmp.eq.s32.totalorder %s34, 1
    %p156 = por %p154, %p155
    %p158 = scmp.ne.s32.totalorder %s143, %s157
    %p159 = scmp.eq.s32.totalorder %s34, 0
    %p160 = por %p158, %p159
    %s162 = sadd.s32 %s161, 1
    %p165 = scmp.eq.s32.totalorder %s28, 1
    %p166 = scmp.ne.s32.totalorder %s161, %s163
    %p167 = scmp.eq.s32.totalorder %s28, 0
    %p168 = por %p166, %p167
    %p169 = scmp.ne.s32.totalorder %s161, %s163
    %p170 = scmp.eq.s32.totalorder %s33, 1
    %p171 = por %p169, %p170
    %p172 = scmp.ne.s32.totalorder %s163, %s164
    %p173 = scmp.eq.s32.totalorder %s33, 0
    %p174 = por %p172, %p173
    %p175 = scmp.ne.s32.totalorder %s163, %s164
    %p176 = scmp.eq.s32.totalorder %s34, 1
    %p177 = por %p175, %p176
    %p179 = scmp.ne.s32.totalorder %s164, %s178
    %p180 = scmp.eq.s32.totalorder %s34, 0
    %p181 = por %p179, %p180
    %s183 = sadd.s32 %s182, 1
    %p186 = scmp.eq.s32.totalorder %s28, 1
    %p187 = scmp.ne.s32.totalorder %s182, %s184
    %p188 = scmp.eq.s32.totalorder %s28, 0
    %p189 = por %p187, %p188
    %p190 = scmp.ne.s32.totalorder %s182, %s184
    %p191 = scmp.eq.s32.totalorder %s33, 1
    %p192 = por %p190, %p191
    %p193 = scmp.ne.s32.totalorder %s184, %s185
    %p194 = scmp.eq.s32.totalorder %s33, 0
    %p195 = por %p193, %p194
    %p196 = scmp.ne.s32.totalorder %s184, %s185
    %p197 = scmp.eq.s32.totalorder %s34, 1
    %p198 = por %p196, %p197
    %p200 = scmp.ne.s32.totalorder %s185, %s199
    %p201 = scmp.eq.s32.totalorder %s34, 0
    %p202 = por %p200, %p201
    %s204 = sadd.s32 %s203, 1
    %p207 = scmp.eq.s32.totalorder %s28, 1
    %p208 = scmp.ne.s32.totalorder %s203, %s205
    %p209 = scmp.eq.s32.totalorder %s28, 0
    %p210 = por %p208, %p209
    %p211 = scmp.ne.s32.totalorder %s203, %s205
    %p212 = scmp.eq.s32.totalorder %s33, 1
    %p213 = por %p211, %p212
    %p214 = scmp.ne.s32.totalorder %s205, %s206
    %p215 = scmp.eq.s32.totalorder %s33, 0
    %p216 = por %p214, %p215
    %p217 = scmp.ne.s32.totalorder %s205, %s206
    %p218 = scmp.eq.s32.totalorder %s34, 1
    %p219 = por %p217, %p218
    %p221 = scmp.ne.s32.totalorder %s206, %s220
    %p222 = scmp.eq.s32.totalorder %s34, 0
    %p223 = por %p221, %p222
    %s225 = sadd.s32 %s224, 1
    %p228 = scmp.eq.s32.totalorder %s28, 1
    %p229 = scmp.ne.s32.totalorder %s224, %s226
    %p230 = scmp.eq.s32.totalorder %s28, 0
    %p231 = por %p229, %p230
    %p232 = scmp.ne.s32.totalorder %s224, %s226
    %p233 = scmp.eq.s32.totalorder %s33, 1
    %p234 = por %p232, %p233
    %p235 = scmp.ne.s32.totalorder %s226, %s227
    %p236 = scmp.eq.s32.totalorder %s33, 0
    %p237 = por %p235, %p236
    %p238 = scmp.ne.s32.totalorder %s226, %s227
    %p239 = scmp.eq.s32.totalorder %s34, 1
    %p240 = por %p238, %p239
    %p242 = scmp.ne.s32.totalorder %s227, %s241
    %p243 = scmp.eq.s32.totalorder %s34, 0
    %p244 = por %p242, %p243
    %s246 = sadd.s32 %s245, 1
    %p249 = scmp.eq.s32.totalorder %s28, 1
    %p250 = scmp.ne.s32.totalorder %s245, %s247
    %p251 = scmp.eq.s32.totalorder %s28, 0
    %p252 = por %p250, %p251
    %p253 = scmp.ne.s32.totalorder %s245, %s247
    %p254 = scmp.eq.s32.totalorder %s33, 1
    %p255 = por %p253, %p254
    %p256 = scmp.ne.s32.totalorder %s247, %s248
    %p257 = scmp.eq.s32.totalorder %s33, 0
    %p258 = por %p256, %p257
    %p259 = scmp.ne.s32.totalorder %s247, %s248
    %p260 = scmp.eq.s32.totalorder %s34, 1
    %p261 = por %p259, %p260
    %p263 = scmp.ne.s32.totalorder %s248, %s262
    %p264 = scmp.eq.s32.totalorder %s34, 0
    %p265 = por %p263, %p264
    %s267 = sadd.s32 %s266, 1
    %p270 = scmp.eq.s32.totalorder %s28, 1
    %p271 = scmp.ne.s32.totalorder %s266, %s268
    %p272 = scmp.eq.s32.totalorder %s28, 0
    %p273 = por %p271, %p272
    %p274 = scmp.ne.s32.totalorder %s266, %s268
    %p275 = scmp.eq.s32.totalorder %s33, 1
    %p276 = por %p274, %p275
    %p277 = scmp.ne.s32.totalorder %s268, %s269
    %p278 = scmp.eq.s32.totalorder %s33, 0
    %p279 = por %p277, %p278
    %p280 = scmp.ne.s32.totalorder %s268, %s269
    %p281 = scmp.eq.s32.totalorder %s34, 1
    %p282 = por %p280, %p281
    %p284 = scmp.ne.s32.totalorder %s269, %s283
    %p285 = scmp.eq.s32.totalorder %s34, 0
    %p286 = por %p284, %p285
    %s288 = sadd.s32 %s287, 1
    %p291 = scmp.eq.s32.totalorder %s28, 1
    %p292 = scmp.ne.s32.totalorder %s287, %s289
    %p293 = scmp.eq.s32.totalorder %s28, 0
    %p294 = por %p292, %p293
    %p295 = scmp.ne.s32.totalorder %s287, %s289
    %p296 = scmp.eq.s32.totalorder %s33, 1
    %p297 = por %p295, %p296
    %p298 = scmp.ne.s32.totalorder %s289, %s290
    %p299 = scmp.eq.s32.totalorder %s33, 0
    %p300 = por %p298, %p299
    %p301 = scmp.ne.s32.totalorder %s289, %s290
    %p302 = scmp.eq.s32.totalorder %s34, 1
    %p303 = por %p301, %p302
    %p305 = scmp.ne.s32.totalorder %s290, %s304
    %p306 = scmp.eq.s32.totalorder %s34, 0
    %p307 = por %p305, %p306
    %s309 = sadd.s32 %s308, 1
    %p312 = scmp.eq.s32.totalorder %s28, 1
    %p313 = scmp.ne.s32.totalorder %s308, %s310
    %p314 = scmp.eq.s32.totalorder %s28, 0
    %p315 = por %p313, %p314
    %p316 = scmp.ne.s32.totalorder %s308, %s310
    %p317 = scmp.eq.s32.totalorder %s33, 1
    %p318 = por %p316, %p317
    %p319 = scmp.ne.s32.totalorder %s310, %s311
    %p320 = scmp.eq.s32.totalorder %s33, 0
    %p321 = por %p319, %p320
    %p322 = scmp.ne.s32.totalorder %s310, %s311
    %p323 = scmp.eq.s32.totalorder %s34, 1
    %p324 = por %p322, %p323
    %p326 = scmp.ne.s32.totalorder %s311, %s325
    %p327 = scmp.eq.s32.totalorder %s34, 0
    %p328 = por %p326, %p327
    %s330 = sadd.s32 %s329, 1
    %p333 = scmp.eq.s32.totalorder %s28, 1
    %p334 = scmp.ne.s32.totalorder %s329, %s331
    %p335 = scmp.eq.s32.totalorder %s28, 0
    %p336 = por %p334, %p335
    %p337 = scmp.ne.s32.totalorder %s329, %s331
    %p338 = scmp.eq.s32.totalorder %s33, 1
    %p339 = por %p337, %p338
    %p340 = scmp.ne.s32.totalorder %s331, %s332
    %p341 = scmp.eq.s32.totalorder %s33, 0
    %p342 = por %p340, %p341
    %p343 = scmp.ne.s32.totalorder %s331, %s332
    %p344 = scmp.eq.s32.totalorder %s34, 1
    %p345 = por %p343, %p344
    %p347 = scmp.ne.s32.totalorder %s332, %s346
    %p348 = scmp.eq.s32.totalorder %s34, 0
    %p349 = por %p347, %p348
    %s351 = sadd.s32 %s350, 1
    %p354 = scmp.eq.s32.totalorder %s28, 1
    %p355 = scmp.ne.s32.totalorder %s350, %s352
    %p356 = scmp.eq.s32.totalorder %s28, 0
    %p357 = por %p355, %p356
    %p358 = scmp.ne.s32.totalorder %s350, %s352
    %p359 = scmp.eq.s32.totalorder %s33, 1
    %p360 = por %p358, %p359
    %p361 = scmp.ne.s32.totalorder %s352, %s353
    %p362 = scmp.eq.s32.totalorder %s33, 0
    %p363 = por %p361, %p362
    %p364 = scmp.ne.s32.totalorder %s352, %s353
    %p365 = scmp.eq.s32.totalorder %s34, 1
    %p366 = por %p364, %p365
    %p368 = scmp.ne.s32.totalorder %s353, %s367
    %p369 = scmp.eq.s32.totalorder %s34, 0
    %p370 = por %p368, %p369
    %s372 = sadd.s32 %s371, 1
    %p375 = scmp.eq.s32.totalorder %s28, 1
    %p376 = scmp.ne.s32.totalorder %s371, %s373
    %p377 = scmp.eq.s32.totalorder %s28, 0
    %p378 = por %p376, %p377
    %p379 = scmp.ne.s32.totalorder %s371, %s373
    %p380 = scmp.eq.s32.totalorder %s33, 1
    %p381 = por %p379, %p380
    %p382 = scmp.ne.s32.totalorder %s373, %s374
    %p383 = scmp.eq.s32.totalorder %s33, 0
    %p384 = por %p382, %p383
    %p385 = scmp.ne.s32.totalorder %s373, %s374
    %p386 = scmp.eq.s32.totalorder %s34, 1
    %p387 = por %p385, %p386
    %p389 = scmp.ne.s32.totalorder %s374, %s388
    %p390 = scmp.eq.s32.totalorder %s34, 0
    %p391 = por %p389, %p390
    %s393 = sadd.s32 %s392, 1
    %p396 = scmp.eq.s32.totalorder %s28, 1
    %p397 = scmp.ne.s32.totalorder %s392, %s394
    %p398 = scmp.eq.s32.totalorder %s28, 0
    %p399 = por %p397, %p398
    %p400 = scmp.ne.s32.totalorder %s392, %s394
    %p401 = scmp.eq.s32.totalorder %s33, 1
    %p402 = por %p400, %p401
    %p403 = scmp.ne.s32.totalorder %s394, %s395
    %p404 = scmp.eq.s32.totalorder %s33, 0
    %p405 = por %p403, %p404
    %p406 = scmp.ne.s32.totalorder %s394, %s395
    %p407 = scmp.eq.s32.totalorder %s34, 1
    %p408 = por %p406, %p407
    %p410 = scmp.ne.s32.totalorder %s395, %s409
    %p411 = scmp.eq.s32.totalorder %s34, 0
    %p412 = por %p410, %p411
    %s414 = sadd.s32 %s413, 1
    %p417 = scmp.eq.s32.totalorder %s28, 1
    %p418 = scmp.ne.s32.totalorder %s413, %s415
    %p419 = scmp.eq.s32.totalorder %s28, 0
    %p420 = por %p418, %p419
    %p421 = scmp.ne.s32.totalorder %s413, %s415
    %p422 = scmp.eq.s32.totalorder %s33, 1
    %p423 = por %p421, %p422
    %p424 = scmp.ne.s32.totalorder %s415, %s416
    %p425 = scmp.eq.s32.totalorder %s33, 0
    %p426 = por %p424, %p425
    %p427 = scmp.ne.s32.totalorder %s415, %s416
    %p428 = scmp.eq.s32.totalorder %s34, 1
    %p429 = por %p427, %p428
    %p431 = scmp.ne.s32.totalorder %s416, %s430
    %p432 = scmp.eq.s32.totalorder %s34, 0
    %p433 = por %p431, %p432
    %s435 = sadd.s32 %s434, 1
    %p438 = scmp.eq.s32.totalorder %s28, 1
    %p439 = scmp.ne.s32.totalorder %s434, %s436
    %p440 = scmp.eq.s32.totalorder %s28, 0
    %p441 = por %p439, %p440
    %p442 = scmp.ne.s32.totalorder %s434, %s436
    %p443 = scmp.eq.s32.totalorder %s33, 1
    %p444 = por %p442, %p443
    %p445 = scmp.ne.s32.totalorder %s436, %s437
    %p446 = scmp.eq.s32.totalorder %s33, 0
    %p447 = por %p445, %p446
    %p448 = scmp.ne.s32.totalorder %s436, %s437
    %p449 = scmp.eq.s32.totalorder %s34, 1
    %p450 = por %p448, %p449
    %p452 = scmp.ne.s32.totalorder %s437, %s451
    %p453 = scmp.eq.s32.totalorder %s34, 0
    %p454 = por %p452, %p453
    %s456 = sadd.s32 %s455, 1
    %p459 = scmp.eq.s32.totalorder %s28, 1
    %p460 = scmp.ne.s32.totalorder %s455, %s457
    %p461 = scmp.eq.s32.totalorder %s28, 0
    %p462 = por %p460, %p461
    %p463 = scmp.ne.s32.totalorder %s455, %s457
    %p464 = scmp.eq.s32.totalorder %s33, 1
    %p465 = por %p463, %p464
    %p466 = scmp.ne.s32.totalorder %s457, %s458
    %p467 = scmp.eq.s32.totalorder %s33, 0
    %p468 = por %p466, %p467
    %p469 = scmp.ne.s32.totalorder %s457, %s458
    %p470 = scmp.eq.s32.totalorder %s34, 1
    %p471 = por %p469, %p470
    %p473 = scmp.ne.s32.totalorder %s458, %s472
    %p474 = scmp.eq.s32.totalorder %s34, 0
    %p475 = por %p473, %p474
    %s477 = sadd.s32 %s476, 1
    %p480 = scmp.eq.s32.totalorder %s28, 1
    %p481 = scmp.ne.s32.totalorder %s476, %s478
    %p482 = scmp.eq.s32.totalorder %s28, 0
    %p483 = por %p481, %p482
    %p484 = scmp.ne.s32.totalorder %s476, %s478
    %p485 = scmp.eq.s32.totalorder %s33, 1
    %p486 = por %p484, %p485
    %p487 = scmp.ne.s32.totalorder %s478, %s479
    %p488 = scmp.eq.s32.totalorder %s33, 0
    %p489 = por %p487, %p488
    %p490 = scmp.ne.s32.totalorder %s478, %s479
    %p491 = scmp.eq.s32.totalorder %s34, 1
    %p492 = por %p490, %p491
    %p494 = scmp.ne.s32.totalorder %s479, %s493
    %p495 = scmp.eq.s32.totalorder %s34, 0
    %p496 = por %p494, %p495
    %s498 = sadd.s32 %s497, 1
    %p501 = scmp.eq.s32.totalorder %s28, 1
    %p502 = scmp.ne.s32.totalorder %s497, %s499
    %p503 = scmp.eq.s32.totalorder %s28, 0
    %p504 = por %p502, %p503
    %p505 = scmp.ne.s32.totalorder %s497, %s499
    %p506 = scmp.eq.s32.totalorder %s33, 1
    %p507 = por %p505, %p506
    %p508 = scmp.ne.s32.totalorder %s499, %s500
    %p509 = scmp.eq.s32.totalorder %s33, 0
    %p510 = por %p508, %p509
    %p511 = scmp.ne.s32.totalorder %s499, %s500
    %p512 = scmp.eq.s32.totalorder %s34, 1
    %p513 = por %p511, %p512
    %p515 = scmp.ne.s32.totalorder %s500, %s514
    %p516 = scmp.eq.s32.totalorder %s34, 0
    %p517 = por %p515, %p516
    %s518 = ssub.s32 %s28, %s35
    %p519 = scmp.eq.s32.totalorder %s518, 0
    %s521 = sadd.s32 %s520, 1
    %s522 = scalar_select %p519, %s520, %s521
    %p525 = pneg %p519
    %p526 = scmp.eq.s32.totalorder %s28, 1
    %p527 = por %p525, %p526
    %p528 = scmp.ne.s32.totalorder %s520, %s523
    %p529 = scmp.eq.s32.totalorder %s28, 0
    %p530 = por %p528, %p529
    %p531 = scmp.ne.s32.totalorder %s520, %s523
    %p532 = scmp.eq.s32.totalorder %s33, 1
    %p533 = por %p531, %p532
    %p534 = scmp.ne.s32.totalorder %s523, %s524
    %p535 = scmp.eq.s32.totalorder %s33, 0
    %p536 = por %p534, %p535
    %p537 = scmp.ne.s32.totalorder %s523, %s524
    %p538 = scmp.eq.s32.totalorder %s34, 1
    %p539 = por %p537, %p538
    %p541 = scmp.ne.s32.totalorder %s524, %s540
    %p542 = scmp.eq.s32.totalorder %s34, 0
    %p543 = por %p541, %p542
    %p544 = scmp.le.s32.totalorder 1, %s28
    %p545 = scmp.lt.s32.totalorder %s28, 3
    %p546 = pnand %p544, %p545
    %p547 = pneg %p546
    // Predicated region
    $region9: #{transformer_decoder_layer.1} parent=5 // pred_check
      _
    $region10: #{transformer_decoder_layer.1} parent=5 // pred_check_branch
      %549 = sbr.rel (%p546) target = $region12
    $region11: #{transformer_decoder_layer.1} parent=5 // pred_region
      %s550 = ssub.s32 %s28, 1
      // Predicated region
      $region13: #{transformer_decoder_layer.1} parent=11 // pred_check
        %p551 = pneg %p153
      $region14: #{transformer_decoder_layer.1} parent=11 // pred_check_branch
        %553 = sbr.rel (%p551) target = $region16
      $region15: #{transformer_decoder_layer.1} parent=11 // pred_region
        _
      $region16: #{transformer_decoder_layer.1} parent=11 // pred_fallthru
        _
      // Predicated region
      $region17: #{transformer_decoder_layer.1} parent=11 // pred_check
        %p554 = pneg %p174
      $region18: #{transformer_decoder_layer.1} parent=11 // pred_check_branch
        %556 = sbr.rel (%p554) target = $region20
      $region19: #{transformer_decoder_layer.1} parent=11 // pred_region
        _
      $region20: #{transformer_decoder_layer.1} parent=11 // pred_fallthru
        _
      // Predicated region
      $region21: #{transformer_decoder_layer.1} parent=11 // pred_check
        %p557 = pneg %p195
      $region22: #{transformer_decoder_layer.1} parent=11 // pred_check_branch
        %559 = sbr.rel (%p557) target = $region24
      $region23: #{transformer_decoder_layer.1} parent=11 // pred_region
        _
      $region24: #{transformer_decoder_layer.1} parent=11 // pred_fallthru
        _
      // Predicated region
      $region25: #{transformer_decoder_layer.1} parent=11 // pred_check
        %p560 = pneg %p216
      $region26: #{transformer_decoder_layer.1} parent=11 // pred_check_branch
        %562 = sbr.rel (%p560) target = $region28
      $region27: #{transformer_decoder_layer.1} parent=11 // pred_region
        _
      $region28: #{transformer_decoder_layer.1} parent=11 // pred_fallthru
        _
      // Predicated region
      $region29: #{transformer_decoder_layer.1} parent=11 // pred_check
        %p563 = pneg %p237
      $region30: #{transformer_decoder_layer.1} parent=11 // pred_check_branch
        %565 = sbr.rel (%p563) target = $region32
      $region31: #{transformer_decoder_layer.1} parent=11 // pred_region
        _
      $region32: #{transformer_decoder_layer.1} parent=11 // pred_fallthru
        _
      // Predicated region
      $region33: #{transformer_decoder_layer.1} parent=11 // pred_check
        %p566 = pneg %p258
      $region34: #{transformer_decoder_layer.1} parent=11 // pred_check_branch
        %568 = sbr.rel (%p566) target = $region36
      $region35: #{transformer_decoder_layer.1} parent=11 // pred_region
        _
      $region36: #{transformer_decoder_layer.1} parent=11 // pred_fallthru
        _
      // Predicated region
      $region37: #{transformer_decoder_layer.1} parent=11 // pred_check
        %p569 = pneg %p279
      $region38: #{transformer_decoder_layer.1} parent=11 // pred_check_branch
        %571 = sbr.rel (%p569) target = $region40
      $region39: #{transformer_decoder_layer.1} parent=11 // pred_region
        _
      $region40: #{transformer_decoder_layer.1} parent=11 // pred_fallthru
        _
      // Predicated region
      $region41: #{transformer_decoder_layer.1} parent=11 // pred_check
        %p572 = pneg %p300
      $region42: #{transformer_decoder_layer.1} parent=11 // pred_check_branch
        %574 = sbr.rel (%p572) target = $region44
      $region43: #{transformer_decoder_layer.1} parent=11 // pred_region
        _
      $region44: #{transformer_decoder_layer.1} parent=11 // pred_fallthru
        _
      // Predicated region
      $region45: #{transformer_decoder_layer.1} parent=11 // pred_check
        %p575 = pneg %p321
      $region46: #{transformer_decoder_layer.1} parent=11 // pred_check_branch
        %577 = sbr.rel (%p575) target = $region48
      $region47: #{transformer_decoder_layer.1} parent=11 // pred_region
        _
      $region48: #{transformer_decoder_layer.1} parent=11 // pred_fallthru
        _
      // Predicated region
      $region49: #{transformer_decoder_layer.1} parent=11 // pred_check
        %p578 = pneg %p342
      $region50: #{transformer_decoder_layer.1} parent=11 // pred_check_branch
        %580 = sbr.rel (%p578) target = $region52
      $region51: #{transformer_decoder_layer.1} parent=11 // pred_region
        _
      $region52: #{transformer_decoder_layer.1} parent=11 // pred_fallthru
        _
      // Predicated region
      $region53: #{transformer_decoder_layer.1} parent=11 // pred_check
        %p581 = pneg %p363
      $region54: #{transformer_decoder_layer.1} parent=11 // pred_check_branch
        %583 = sbr.rel (%p581) target = $region56
      $region55: #{transformer_decoder_layer.1} parent=11 // pred_region
        _
      $region56: #{transformer_decoder_layer.1} parent=11 // pred_fallthru
        _
      // Predicated region
      $region57: #{transformer_decoder_layer.1} parent=11 // pred_check
        %p584 = pneg %p384
      $region58: #{transformer_decoder_layer.1} parent=11 // pred_check_branch
        %586 = sbr.rel (%p584) target = $region60
      $region59: #{transformer_decoder_layer.1} parent=11 // pred_region
        _
      $region60: #{transformer_decoder_layer.1} parent=11 // pred_fallthru
        _
      // Predicated region
      $region61: #{transformer_decoder_layer.1} parent=11 // pred_check
        %p587 = pneg %p405
      $region62: #{transformer_decoder_layer.1} parent=11 // pred_check_branch
        %589 = sbr.rel (%p587) target = $region64
      $region63: #{transformer_decoder_layer.1} parent=11 // pred_region
        _
      $region64: #{transformer_decoder_layer.1} parent=11 // pred_fallthru
        _
      // Predicated region
      $region65: #{transformer_decoder_layer.1} parent=11 // pred_check
        %p590 = pneg %p426
      $region66: #{transformer_decoder_layer.1} parent=11 // pred_check_branch
        %592 = sbr.rel (%p590) target = $region68
      $region67: #{transformer_decoder_layer.1} parent=11 // pred_region
        _
      $region68: #{transformer_decoder_layer.1} parent=11 // pred_fallthru
        _
      // Predicated region
      $region69: #{transformer_decoder_layer.1} parent=11 // pred_check
        %p593 = pneg %p447
      $region70: #{transformer_decoder_layer.1} parent=11 // pred_check_branch
        %595 = sbr.rel (%p593) target = $region72
      $region71: #{transformer_decoder_layer.1} parent=11 // pred_region
        _
      $region72: #{transformer_decoder_layer.1} parent=11 // pred_fallthru
        _
      // Predicated region
      $region73: #{transformer_decoder_layer.1} parent=11 // pred_check
        %p596 = pneg %p468
      $region74: #{transformer_decoder_layer.1} parent=11 // pred_check_branch
        %598 = sbr.rel (%p596) target = $region76
      $region75: #{transformer_decoder_layer.1} parent=11 // pred_region
        _
      $region76: #{transformer_decoder_layer.1} parent=11 // pred_fallthru
        _
      // Predicated region
      $region77: #{transformer_decoder_layer.1} parent=11 // pred_check
        %p599 = pneg %p489
      $region78: #{transformer_decoder_layer.1} parent=11 // pred_check_branch
        %601 = sbr.rel (%p599) target = $region80
      $region79: #{transformer_decoder_layer.1} parent=11 // pred_region
        _
      $region80: #{transformer_decoder_layer.1} parent=11 // pred_fallthru
        _
      // Predicated region
      $region81: #{transformer_decoder_layer.1} parent=11 // pred_check
        %p602 = pneg %p510
      $region82: #{transformer_decoder_layer.1} parent=11 // pred_check_branch
        %604 = sbr.rel (%p602) target = $region84
      $region83: #{transformer_decoder_layer.1} parent=11 // pred_region
        _
      $region84: #{transformer_decoder_layer.1} parent=11 // pred_fallthru
        _
    $region12: #{transformer_decoder_layer.1} parent=5 // pred_fallthru
      _
    %p605 = scmp.lt.s32.totalorder %s28, 2
    // Predicated region
    $region85: #{transformer_decoder_layer.1} parent=5 // pred_check
      %p606 = pneg %p605
    $region86: #{transformer_decoder_layer.1} parent=5 // pred_check_branch
      %608 = sbr.rel (%p606) target = $region88
    $region87: #{transformer_decoder_layer.1} parent=5 // pred_region
      // Predicated region
      $region89: #{transformer_decoder_layer.1} parent=87 // pred_check
        %p609 = pneg %p48
      $region90: #{transformer_decoder_layer.1} parent=87 // pred_check_branch
        %611 = sbr.rel (%p609) target = $region92
      $region91: #{transformer_decoder_layer.1} parent=87 // pred_region
        %p612 = scmp.lt.s32.totalorder %s28, 1
        %s613 = scalar_select %p612, %s28, 1
        %s614 = smul.addr %s613, 8
        %s615 = scalar_lea.vmem %s0, %s614
      $region92: #{transformer_decoder_layer.1} parent=87 // pred_fallthru
        _
      // Predicated region
      $region93: #{transformer_decoder_layer.1} parent=87 // pred_check
        %p616 = pneg %p74
      $region94: #{transformer_decoder_layer.1} parent=87 // pred_check_branch
        %618 = sbr.rel (%p616) target = $region96
      $region95: #{transformer_decoder_layer.1} parent=87 // pred_region
        %p619 = scmp.lt.s32.totalorder %s28, 1
        %s620 = scalar_select %p619, %s28, 1
        %s621 = smul.addr %s620, 8
        %s622 = scalar_lea.vmem %s1, %s621
      $region96: #{transformer_decoder_layer.1} parent=87 // pred_fallthru
        _
      // Predicated region
      $region97: #{transformer_decoder_layer.1} parent=87 // pred_check
        %p623 = pneg %p100
      $region98: #{transformer_decoder_layer.1} parent=87 // pred_check_branch
        %625 = sbr.rel (%p623) target = $region100
      $region99: #{transformer_decoder_layer.1} parent=87 // pred_region
        %p626 = scmp.lt.s32.totalorder %s28, 1
        %s627 = scalar_select %p626, %s28, 1
        %s628 = smul.addr %s627, 8
        %s629 = scalar_lea.vmem %s2, %s628
      $region100: #{transformer_decoder_layer.1} parent=87 // pred_fallthru
        _
      // Predicated region
      $region101: #{transformer_decoder_layer.1} parent=87 // pred_check
        %p630 = pneg %p126
      $region102: #{transformer_decoder_layer.1} parent=87 // pred_check_branch
        %632 = sbr.rel (%p630) target = $region104
      $region103: #{transformer_decoder_layer.1} parent=87 // pred_region
        %p633 = scmp.lt.s32.totalorder %s28, 1
        %s634 = scalar_select %p633, %s28, 1
        %s635 = smul.addr %s634, 8
        %s636 = scalar_lea.vmem %s3, %s635
      $region104: #{transformer_decoder_layer.1} parent=87 // pred_fallthru
        _
    $region88: #{transformer_decoder_layer.1} parent=5 // pred_fallthru
      _
    %p637 = scmp.le.s32.totalorder 1, %s28
    %p638 = scmp.lt.s32.totalorder %s28, 3
    %p639 = pnand %p637, %p638
    %p640 = pneg %p639
    // Predicated region
    $region105: #{transformer_decoder_layer.1} parent=5 // pred_check
      _
    $region106: #{transformer_decoder_layer.1} parent=5 // pred_check_branch
      %642 = sbr.rel (%p639) target = $region108
    $region107: #{transformer_decoder_layer.1} parent=5 // pred_region
      %s643 = ssub.s32 %s28, 1
      %p644 = scmp.lt.s32.totalorder %s33, 1
      %s645 = scalar_select %p644, %s33, 1
      %s646 = smul.addr %s645, 8
      %s647 = scalar_lea.vmem %s0, %s646
      %p648 = pneg %p54
      %p649 = pneg %p51
      %p650 = scmp.lt.s32.totalorder %s33, 1
      %s651 = scalar_select %p650, %s33, 1
      %s652 = smul.addr %s651, 8
      %s653 = scalar_lea.vmem %s1, %s652
      %p654 = pneg %p80
      %p655 = pneg %p77
      %p656 = scmp.lt.s32.totalorder %s33, 1
      %s657 = scalar_select %p656, %s33, 1
      %s658 = smul.addr %s657, 8
      %s659 = scalar_lea.vmem %s2, %s658
      %p660 = pneg %p106
      %p661 = pneg %p103
      %p662 = scmp.lt.s32.totalorder %s33, 1
      %s663 = scalar_select %p662, %s33, 1
      %s664 = smul.addr %s663, 8
      %s665 = scalar_lea.vmem %s3, %s664
      %p666 = pneg %p132
      %p667 = pneg %p129
      %p668 = pneg %p153
      %p669 = pneg %p150
      %p670 = pneg %p174
      %p671 = pneg %p171
      %p672 = pneg %p195
      %p673 = pneg %p192
      %p674 = pneg %p216
      %p675 = pneg %p213
      %p676 = pneg %p237
      %p677 = pneg %p234
      %p678 = pneg %p258
      %p679 = pneg %p255
      %p680 = pneg %p279
      %p681 = pneg %p276
      %p682 = pneg %p300
      %p683 = pneg %p297
      %p684 = pneg %p321
      %p685 = pneg %p318
      %p686 = pneg %p342
      %p687 = pneg %p339
      %p688 = pneg %p363
      %p689 = pneg %p360
      %p690 = pneg %p384
      %p691 = pneg %p381
      %p692 = pneg %p405
      %p693 = pneg %p402
      %p694 = pneg %p426
      %p695 = pneg %p423
      %p696 = pneg %p447
      %p697 = pneg %p444
      %p698 = pneg %p468
      %p699 = pneg %p465
      %p700 = pneg %p489
      %p701 = pneg %p486
      %p702 = pneg %p510
      %p703 = pneg %p507
      %p704 = pneg %p536
      %p705 = pneg %p533
      %p706 = scmp.lt.s32.totalorder %s33, 1
      %s707 = scalar_select %p706, %s33, 1
      %s708 = smul.addr %s707, 8
      %s709 = scalar_lea.vmem %s22, %s708
      %p710 = scmp.lt.s32.totalorder %s33, 1
      %s711 = scalar_select %p710, %s33, 1
      %s712 = smul.addr %s711, 8
      %s713 = scalar_lea.vmem %s0, %s712
      %p714 = scmp.lt.s32.totalorder %s33, 1
      %s715 = scalar_select %p714, %s33, 1
      %s716 = smul.addr %s715, 8
      %s717 = scalar_lea.vmem %s1, %s716
      %p718 = scmp.lt.s32.totalorder %s33, 1
      %s719 = scalar_select %p718, %s33, 1
      %s720 = smul.addr %s719, 8
      %s721 = scalar_lea.vmem %s2, %s720
      %p722 = scmp.lt.s32.totalorder %s33, 1
      %s723 = scalar_select %p722, %s33, 1
      %s724 = smul.addr %s723, 8
      %s725 = scalar_lea.vmem %s3, %s724
      %p726 = scmp.lt.s32.totalorder %s33, 1
      %s727 = scalar_select %p726, %s33, 1
      %s728 = smul.addr %s727, 8
      %s729 = scalar_lea.vmem %s22, %s728
      %v731 = vld [vmem:[%s713] sm:$0xff]
      %v732 = vld [vmem:[%s717] sm:$0xff]
      %v733 = vld [vmem:[%s721] sm:$0xff]
      %v734 = vld [vmem:[%s725] sm:$0xff]
      %v735 = vld [vmem:[%s4] sm:$0xf]
      %v736 = vld [vmem:[%s4 + $0x4] sm:$0xf]
      %v737 = vld [vmem:[%s4 + $0x8] sm:$0xf]
      %v738 = vld [vmem:[%s4 + $0xc] sm:$0xf]
      %v739 = vld [vmem:[%s5] sm:$0x1]
      %v740 = vadd.f32 %v731, %v732
      %v741 = vpack.c.bf16 %v740, %v740
      %v743 = vperm.slane %v739, 0
      %v749 = vunpack.c.l.b16 %v735
      %v750 = vunpack.c.l.b16 %v736
      %v751 = vunpack.c.l.b16 %v737
      %v752 = vunpack.c.l.b16 %v738
      %v753 = vpack.c.b16 %v750, %v749
      %v754 = vpack.c.b16 %v752, %v751
      %vm757 = vcmask 261120
      %v759 = vsel %vm757, %v741, 0
      %761 = vmatpush.bf16.msra.mxu0 0
      %762 = vmatpush.bf16.msra.mxu0 0
      %763 = vmatpush.bf16.msra.mxu0 0
      %764 = vmatpush.bf16.msra.mxu0 0
      %765 = vmatpush.bf16.msra.mxu0 0
      %766 = vmatpush.bf16.msra.mxu0 0
      %767 = vmatpush.bf16.msra.mxu0 %v754
      %768 = vmatpush.bf16.msra.mxu0 %v753
      %769 = vmatmul.bf16.gmra.mxu0 %v759
      %v770 = vpop.f32.mrf.mxu0
      %v771 = vadd.f32 %v743, %v770
      %v772 = vpop.f32.mrf.mxu0
      %773 = vdwg.mxu0
      %v774 = vpack.c.bf16 %v731, %v731
      %775 = vrot.lane.b32.xlu0 %v753, 64
      %v776 = vpop.permute.xlu0 %775
      %777 = vrot.lane.b32.xlu0 %v754, 64
      %v778 = vpop.permute.xlu0 %777
      %781 = vrot.lane.b32.xlu0 %v743, 64
      %v782 = vpop.permute.xlu0 %781
      %v785 = vsel %vm757, %v774, 0
      %787 = vmatpush.bf16.msra.mxu0 0
      %788 = vmatpush.bf16.msra.mxu0 0
      %789 = vmatpush.bf16.msra.mxu0 0
      %790 = vmatpush.bf16.msra.mxu0 0
      %791 = vmatpush.bf16.msra.mxu0 0
      %792 = vmatpush.bf16.msra.mxu0 0
      %793 = vmatpush.bf16.msra.mxu0 %v778
      %794 = vmatpush.bf16.msra.mxu0 %v776
      %795 = vmatmul.bf16.gmra.mxu0 %v785
      %v796 = vpop.f32.mrf.mxu0
      %v797 = vadd.f32 %v782, %v796
      %v798 = vpop.f32.mrf.mxu0
      %799 = vdwg.mxu0
      %v800 = vmul.f32 %v771, 0.35355338
      %v801 = vpack.c.bf16 %v800, %v800
      %v802 = vpack.c.bf16 %v771, %v771
      %v803 = vpack.c.bf16 %v797, %v797
      %805 = vrot.lane.b32.xlu0 %v802, 96
      %v806 = vpop.permute.xlu0 %805
      %vm807 = vcmask 64512
      %v809 = vsel %vm807, %v801, 0
      %v812 = vsel %vm807, %v806, 0
      %814 = vmatpush.bf16.xpose.msra.mxu0 0
      %815 = vmatpush.bf16.xpose.msra.mxu0 0
      %816 = vmatpush.bf16.xpose.msra.mxu0 0
      %817 = vmatpush.bf16.xpose.msra.mxu0 0
      %818 = vmatpush.bf16.xpose.msra.mxu0 0
      %819 = vmatpush.bf16.xpose.msra.mxu0 0
      %820 = vmatpush.bf16.xpose.msra.mxu0 0
      %821 = vmatpush.bf16.xpose.msra.mxu0 %v812
      %822 = vmatmul.bf16.gmra.mxu0 %v809
      %v823 = vpop.f32.mrf.mxu0
      %v824 = vadd.f32 0.0, %v823
      %v825 = vpop.f32.mrf.mxu0
      %826 = vdwg.mxu0
      %v827 = vsel %vm807, %v824, -inf
      %828 = vmax.xlane.f32.xlu0 %v827
      %v829 = vpop.xlane.xlu0 %828
      %v830 = vsub.f32 %v824, %v829
      %v831 = vmul.f32 %v830, 1.442695
      %v832 = vpow.pop %v831
      %v833 = vsel %vm807, %v832, 0.0
      %834 = vadd.xlane.f32.xlu0 %v833
      %v835 = vpop.xlane.xlu0 %834
      %v836 = vrcp.pop %v835
      %v837 = vmul.f32 %v832, %v836
      %v838 = vpack.c.bf16 %v837, %v837
      %v840 = vsel %vm807, %v838, 0
      %vm842 = vcmask 1043456
      %v844 = vsel %vm842, %v803, 0
      %846 = vmatpush.bf16.msra.mxu0 0
      %847 = vmatpush.bf16.msra.mxu0 0
      %848 = vmatpush.bf16.msra.mxu0 0
      %849 = vmatpush.bf16.msra.mxu0 0
      %850 = vmatpush.bf16.msra.mxu0 0
      %851 = vmatpush.bf16.msra.mxu0 0
      %852 = vmatpush.bf16.msra.mxu0 0
      %853 = vmatpush.bf16.msra.mxu0 %v844
      %854 = vmatmul.bf16.gmra.mxu0 %v840
      %v855 = vpop.f32.mrf.mxu0
      %v856 = vadd.f32 0.0, %v855
      %v857 = vpop.f32.mrf.mxu0
      %858 = vdwg.mxu0
      %860 = vrot.lane.b32.xlu0 %v801, 120
      %v861 = vpop.permute.xlu0 %860
      %862 = vrot.lane.b32.xlu0 %v802, 88
      %v863 = vpop.permute.xlu0 %862
      %v865 = vsel %vm807, %v861, 0
      %v868 = vsel %vm807, %v863, 0
      %870 = vmatpush.bf16.xpose.msra.mxu0 0
      %871 = vmatpush.bf16.xpose.msra.mxu0 0
      %872 = vmatpush.bf16.xpose.msra.mxu0 0
      %873 = vmatpush.bf16.xpose.msra.mxu0 0
      %874 = vmatpush.bf16.xpose.msra.mxu0 0
      %875 = vmatpush.bf16.xpose.msra.mxu0 0
      %876 = vmatpush.bf16.xpose.msra.mxu0 0
      %877 = vmatpush.bf16.xpose.msra.mxu0 %v868
      %878 = vmatmul.bf16.gmra.mxu0 %v865
      %v879 = vpop.f32.mrf.mxu0
      %v880 = vadd.f32 0.0, %v879
      %v881 = vpop.f32.mrf.mxu0
      %882 = vdwg.mxu0
      %v883 = vsel %vm807, %v880, -inf
      %884 = vmax.xlane.f32.xlu0 %v883
      %v885 = vpop.xlane.xlu0 %884
      %v886 = vsub.f32 %v880, %v885
      %v887 = vmul.f32 %v886, 1.442695
      %v888 = vpow.pop %v887
      %v889 = vsel %vm807, %v888, 0.0
      %890 = vadd.xlane.f32.xlu0 %v889
      %v891 = vpop.xlane.xlu0 %890
      %v892 = vrcp.pop %v891
      %v893 = vmul.f32 %v888, %v892
      %v894 = vpack.c.bf16 %v893, %v893
      %896 = vrot.lane.b32.xlu0 %v803, 120
      %v897 = vpop.permute.xlu0 %896
      %v899 = vsel %vm807, %v894, 0
      %v902 = vsel %vm842, %v897, 0
      %904 = vmatpush.bf16.msra.mxu0 0
      %905 = vmatpush.bf16.msra.mxu0 0
      %906 = vmatpush.bf16.msra.mxu0 0
      %907 = vmatpush.bf16.msra.mxu0 0
      %908 = vmatpush.bf16.msra.mxu0 0
      %909 = vmatpush.bf16.msra.mxu0 0
      %910 = vmatpush.bf16.msra.mxu0 0
      %911 = vmatpush.bf16.msra.mxu0 %v902
      %912 = vmatmul.bf16.gmra.mxu0 %v899
      %v913 = vpop.f32.mrf.mxu0
      %v914 = vadd.f32 0.0, %v913
      %v915 = vpop.f32.mrf.mxu0
      %916 = vdwg.mxu0
      %917 = vrot.lane.b32.xlu0 %v801, 112
      %v918 = vpop.permute.xlu0 %917
      %919 = vrot.lane.b32.xlu0 %v802, 80
      %v920 = vpop.permute.xlu0 %919
      %v922 = vsel %vm807, %v918, 0
      %v925 = vsel %vm807, %v920, 0
      %927 = vmatpush.bf16.xpose.msra.mxu0 0
      %928 = vmatpush.bf16.xpose.msra.mxu0 0
      %929 = vmatpush.bf16.xpose.msra.mxu0 0
      %930 = vmatpush.bf16.xpose.msra.mxu0 0
      %931 = vmatpush.bf16.xpose.msra.mxu0 0
      %932 = vmatpush.bf16.xpose.msra.mxu0 0
      %933 = vmatpush.bf16.xpose.msra.mxu0 0
      %934 = vmatpush.bf16.xpose.msra.mxu0 %v925
      %935 = vmatmul.bf16.gmra.mxu0 %v922
      %v936 = vpop.f32.mrf.mxu0
      %v937 = vadd.f32 0.0, %v936
      %v938 = vpop.f32.mrf.mxu0
      %939 = vdwg.mxu0
      %v940 = vsel %vm807, %v937, -inf
      %941 = vmax.xlane.f32.xlu0 %v940
      %v942 = vpop.xlane.xlu0 %941
      %v943 = vsub.f32 %v937, %v942
      %v944 = vmul.f32 %v943, 1.442695
      %v945 = vpow.pop %v944
      %v946 = vsel %vm807, %v945, 0.0
      %947 = vadd.xlane.f32.xlu0 %v946
      %v948 = vpop.xlane.xlu0 %947
      %v949 = vrcp.pop %v948
      %v950 = vmul.f32 %v945, %v949
      %v951 = vpack.c.bf16 %v950, %v950
      %952 = vrot.lane.b32.xlu0 %v803, 112
      %v953 = vpop.permute.xlu0 %952
      %v955 = vsel %vm807, %v951, 0
      %v958 = vsel %vm842, %v953, 0
      %960 = vmatpush.bf16.msra.mxu0 0
      %961 = vmatpush.bf16.msra.mxu0 0
      %962 = vmatpush.bf16.msra.mxu0 0
      %963 = vmatpush.bf16.msra.mxu0 0
      %964 = vmatpush.bf16.msra.mxu0 0
      %965 = vmatpush.bf16.msra.mxu0 0
      %966 = vmatpush.bf16.msra.mxu0 0
      %967 = vmatpush.bf16.msra.mxu0 %v958
      %968 = vmatmul.bf16.gmra.mxu0 %v955
      %v969 = vpop.f32.mrf.mxu0
      %v970 = vadd.f32 0.0, %v969
      %v971 = vpop.f32.mrf.mxu0
      %972 = vdwg.mxu0
      %973 = vrot.lane.b32.xlu0 %v801, 104
      %v974 = vpop.permute.xlu0 %973
      %975 = vrot.lane.b32.xlu0 %v802, 72
      %v976 = vpop.permute.xlu0 %975
      %v978 = vsel %vm807, %v974, 0
      %v981 = vsel %vm807, %v976, 0
      %983 = vmatpush.bf16.xpose.msra.mxu0 0
      %984 = vmatpush.bf16.xpose.msra.mxu0 0
      %985 = vmatpush.bf16.xpose.msra.mxu0 0
      %986 = vmatpush.bf16.xpose.msra.mxu0 0
      %987 = vmatpush.bf16.xpose.msra.mxu0 0
      %988 = vmatpush.bf16.xpose.msra.mxu0 0
      %989 = vmatpush.bf16.xpose.msra.mxu0 0
      %990 = vmatpush.bf16.xpose.msra.mxu0 %v981
      %991 = vmatmul.bf16.gmra.mxu0 %v978
      %v992 = vpop.f32.mrf.mxu0
      %v993 = vadd.f32 0.0, %v992
      %v994 = vpop.f32.mrf.mxu0
      %995 = vdwg.mxu0
      %v996 = vsel %vm807, %v993, -inf
      %997 = vmax.xlane.f32.xlu0 %v996
      %v998 = vpop.xlane.xlu0 %997
      %v999 = vsub.f32 %v993, %v998
      %v1000 = vmul.f32 %v999, 1.442695
      %v1001 = vpow.pop %v1000
      %v1002 = vsel %vm807, %v1001, 0.0
      %1003 = vadd.xlane.f32.xlu0 %v1002
      %v1004 = vpop.xlane.xlu0 %1003
      %v1005 = vrcp.pop %v1004
      %v1006 = vmul.f32 %v1001, %v1005
      %v1007 = vpack.c.bf16 %v1006, %v1006
      %1008 = vrot.lane.b32.xlu0 %v803, 104
      %v1009 = vpop.permute.xlu0 %1008
      %v1011 = vsel %vm807, %v1007, 0
      %v1014 = vsel %vm842, %v1009, 0
      %1016 = vmatpush.bf16.msra.mxu0 0
      %1017 = vmatpush.bf16.msra.mxu0 0
      %1018 = vmatpush.bf16.msra.mxu0 0
      %1019 = vmatpush.bf16.msra.mxu0 0
      %1020 = vmatpush.bf16.msra.mxu0 0
      %1021 = vmatpush.bf16.msra.mxu0 0
      %1022 = vmatpush.bf16.msra.mxu0 0
      %1023 = vmatpush.bf16.msra.mxu0 %v1014
      %1024 = vmatmul.bf16.gmra.mxu0 %v1011
      %v1025 = vpop.f32.mrf.mxu0
      %v1026 = vadd.f32 0.0, %v1025
      %v1027 = vpop.f32.mrf.mxu0
      %1028 = vdwg.mxu0
      %1030 = vrot.lane.b32.xlu0 %v914, 8
      %v1031 = vpop.permute.xlu0 %1030
      %1034 = vrot.lane.b32.xlu0 %v970, 16
      %v1035 = vpop.permute.xlu0 %1034
      %1038 = vrot.lane.b32.xlu0 %v1026, 24
      %v1039 = vpop.permute.xlu0 %1038
      %v1041 = vsel %vm807, %v856, %v1031
      %vm1042 = vcmask 130048
      %v1043 = vsel %vm1042, %v1041, %v1035
      %vm1044 = vcmask 195584
      %v1045 = vsel %vm1044, %v1043, %v1039
      %v1046 = vld [vmem:[%s6] sm:$0xf]
      %v1047 = vld [vmem:[%s6 + $0x4] sm:$0xf]
      %v1048 = vld [vmem:[%s6 + $0x8] sm:$0xf]
      %v1049 = vld [vmem:[%s6 + $0xc] sm:$0xf]
      %v1050 = vld [vmem:[%s7] sm:$0x1]
      %v1051 = vpack.c.bf16 %v1045, %v1045
      %v1053 = vperm.slane %v1050, 0
      %v1059 = vunpack.c.l.b16 %v1046
      %v1060 = vunpack.c.l.b16 %v1047
      %v1061 = vunpack.c.l.b16 %v1048
      %v1062 = vunpack.c.l.b16 %v1049
      %v1063 = vpack.c.b16 %v1060, %v1059
      %v1064 = vpack.c.b16 %v1062, %v1061
      %v1068 = vsel %vm757, %v1051, 0
      %1070 = vmatpush.bf16.msra.mxu0 0
      %1071 = vmatpush.bf16.msra.mxu0 0
      %1072 = vmatpush.bf16.msra.mxu0 0
      %1073 = vmatpush.bf16.msra.mxu0 0
      %1074 = vmatpush.bf16.msra.mxu0 0
      %1075 = vmatpush.bf16.msra.mxu0 0
      %1076 = vmatpush.bf16.msra.mxu0 %v1064
      %1077 = vmatpush.bf16.msra.mxu0 %v1063
      %1078 = vmatmul.bf16.gmra.mxu0 %v1068
      %v1079 = vpop.f32.mrf.mxu0
      %v1080 = vadd.f32 %v1053, %v1079
      %v1081 = vpop.f32.mrf.mxu0
      %1082 = vdwg.mxu0
      %v1083 = vadd.f32 %v731, %v1080
      %v1084 = vld [vmem:[%s8] sm:$0x1]
      %v1085 = vld [vmem:[%s9] sm:$0x1]
      %v1086 = vsel %vm757, %v1083, 0.0
      %1087 = vadd.xlane.f32.xlu0 %v1086
      %v1088 = vpop.xlane.xlu0 %1087
      %v1089 = vrcp.pop 32.0
      %v1090 = vmul.f32 32.0, %v1089
      %v1091 = vsub.f32 1.0, %v1090
      %v1092 = vmul.f32 %v1089, %v1091
      %v1093 = vadd.f32 %v1089, %v1092
      %vm1094 = vweird.f32 %v1089
      %v1095 = vsel %vm1094, %v1089, %v1093
      %v1096 = vmul.f32 %v1088, %v1095
      %v1097 = vsub.f32 %v1083, %v1096
      %v1098 = vmul.f32 %v1097, %v1097
      %v1099 = vsel %vm757, %v1098, 0.0
      %1100 = vadd.xlane.f32.xlu0 %v1099
      %v1101 = vpop.xlane.xlu0 %1100
      %v1102 = vmul.f32 %v1101, %v1095
      %v1103 = vadd.f32 %v1102, 1e-05
      %v1104 = vrsqrt.pop %v1103
      %v1105 = vmul.f32 %v1104, %v1103
      %v1106 = vmul.f32 %v1105, %v1104
      %v1107 = vmul.f32 0.5, %v1106
      %v1108 = vsub.f32 1.5, %v1107
      %v1109 = vmul.f32 %v1104, %v1108
      %vm1110 = vweird.f32 %v1103
      %vm1111 = vweird.f32 %v1104
      %vm1112 = vmor %vm1110, %vm1111
      %v1113 = vsel %vm1112, %v1104, %v1109
      %v1114 = vmul.f32 %v1097, %v1113
      %v1116 = vperm.slane %v1084, 0
      %v1118 = vmul.f32 %v1114, %v1116
      %v1120 = vperm.slane %v1085, 0
      %v1122 = vadd.f32 %v1118, %v1120
      %v1123 = vld [vmem:[%s10] sm:$0xf]
      %v1124 = vld [vmem:[%s10 + $0x4] sm:$0xf]
      %v1125 = vld [vmem:[%s10 + $0x8] sm:$0xf]
      %v1126 = vld [vmem:[%s10 + $0xc] sm:$0xf]
      %v1127 = vld [vmem:[%s11] sm:$0x1]
      %v1128 = vadd.f32 %v1122, %v732
      %v1129 = vpack.c.bf16 %v1128, %v1128
      %v1131 = vperm.slane %v1127, 0
      %v1137 = vunpack.c.l.b16 %v1123
      %v1138 = vunpack.c.l.b16 %v1124
      %v1139 = vunpack.c.l.b16 %v1125
      %v1140 = vunpack.c.l.b16 %v1126
      %v1141 = vpack.c.b16 %v1138, %v1137
      %v1142 = vpack.c.b16 %v1140, %v1139
      %v1146 = vsel %vm757, %v1129, 0
      %1148 = vmatpush.bf16.msra.mxu0 0
      %1149 = vmatpush.bf16.msra.mxu0 0
      %1150 = vmatpush.bf16.msra.mxu0 0
      %1151 = vmatpush.bf16.msra.mxu0 0
      %1152 = vmatpush.bf16.msra.mxu0 0
      %1153 = vmatpush.bf16.msra.mxu0 0
      %1154 = vmatpush.bf16.msra.mxu0 %v1142
      %1155 = vmatpush.bf16.msra.mxu0 %v1141
      %1156 = vmatmul.bf16.gmra.mxu0 %v1146
      %v1157 = vpop.f32.mrf.mxu0
      %v1158 = vadd.f32 %v1131, %v1157
      %v1159 = vpop.f32.mrf.mxu0
      %1160 = vdwg.mxu0
      %v1161 = vadd.f32 %v733, %v734
      %v1162 = vpack.c.bf16 %v1161, %v1161
      %1163 = vrot.lane.b32.xlu0 %v1141, 96
      %v1164 = vpop.permute.xlu0 %1163
      %1165 = vrot.lane.b32.xlu0 %v1142, 96
      %v1166 = vpop.permute.xlu0 %1165
      %1169 = vrot.lane.b32.xlu0 %v1131, 96
      %v1170 = vpop.permute.xlu0 %1169
      %v1173 = vsel %vm757, %v1162, 0
      %1175 = vmatpush.bf16.msra.mxu0 0
      %1176 = vmatpush.bf16.msra.mxu0 0
      %1177 = vmatpush.bf16.msra.mxu0 0
      %1178 = vmatpush.bf16.msra.mxu0 0
      %1179 = vmatpush.bf16.msra.mxu0 0
      %1180 = vmatpush.bf16.msra.mxu0 0
      %1181 = vmatpush.bf16.msra.mxu0 %v1166
      %1182 = vmatpush.bf16.msra.mxu0 %v1164
      %1183 = vmatmul.bf16.gmra.mxu0 %v1173
      %v1184 = vpop.f32.mrf.mxu0
      %v1185 = vadd.f32 %v1170, %v1184
      %v1186 = vpop.f32.mrf.mxu0
      %1187 = vdwg.mxu0
      %v1188 = vpack.c.bf16 %v733, %v733
      %1189 = vrot.lane.b32.xlu0 %v1141, 64
      %v1190 = vpop.permute.xlu0 %1189
      %1191 = vrot.lane.b32.xlu0 %v1142, 64
      %v1192 = vpop.permute.xlu0 %1191
      %1195 = vrot.lane.b32.xlu0 %v1131, 64
      %v1196 = vpop.permute.xlu0 %1195
      %v1199 = vsel %vm757, %v1188, 0
      %1201 = vmatpush.bf16.msra.mxu0 0
      %1202 = vmatpush.bf16.msra.mxu0 0
      %1203 = vmatpush.bf16.msra.mxu0 0
      %1204 = vmatpush.bf16.msra.mxu0 0
      %1205 = vmatpush.bf16.msra.mxu0 0
      %1206 = vmatpush.bf16.msra.mxu0 0
      %1207 = vmatpush.bf16.msra.mxu0 %v1192
      %1208 = vmatpush.bf16.msra.mxu0 %v1190
      %1209 = vmatmul.bf16.gmra.mxu0 %v1199
      %v1210 = vpop.f32.mrf.mxu0
      %v1211 = vadd.f32 %v1196, %v1210
      %v1212 = vpop.f32.mrf.mxu0
      %1213 = vdwg.mxu0
      %v1214 = vmul.f32 %v1158, 0.35355338
      %v1215 = vpack.c.bf16 %v1214, %v1214
      %v1216 = vpack.c.bf16 %v1185, %v1185
      %v1217 = vpack.c.bf16 %v1211, %v1211
      %v1219 = vsel %vm807, %v1215, 0
      %v1222 = vsel %vm807, %v1216, 0
      %1224 = vmatpush.bf16.xpose.msra.mxu0 0
      %1225 = vmatpush.bf16.xpose.msra.mxu0 0
      %1226 = vmatpush.bf16.xpose.msra.mxu0 0
      %1227 = vmatpush.bf16.xpose.msra.mxu0 0
      %1228 = vmatpush.bf16.xpose.msra.mxu0 0
      %1229 = vmatpush.bf16.xpose.msra.mxu0 0
      %1230 = vmatpush.bf16.xpose.msra.mxu0 0
      %1231 = vmatpush.bf16.xpose.msra.mxu0 %v1222
      %1232 = vmatmul.bf16.gmra.mxu0 %v1219
      %v1233 = vpop.f32.mrf.mxu0
      %v1234 = vadd.f32 0.0, %v1233
      %v1235 = vpop.f32.mrf.mxu0
      %1236 = vdwg.mxu0
      %v1237 = vsel %vm807, %v1234, -inf
      %1238 = vmax.xlane.f32.xlu0 %v1237
      %v1239 = vpop.xlane.xlu0 %1238
      %v1240 = vsub.f32 %v1234, %v1239
      %v1241 = vmul.f32 %v1240, 1.442695
      %v1242 = vpow.pop %v1241
      %v1243 = vsel %vm807, %v1242, 0.0
      %1244 = vadd.xlane.f32.xlu0 %v1243
      %v1245 = vpop.xlane.xlu0 %1244
      %v1246 = vrcp.pop %v1245
      %v1247 = vmul.f32 %v1242, %v1246
      %v1248 = vpack.c.bf16 %v1247, %v1247
      %v1250 = vsel %vm807, %v1248, 0
      %v1253 = vsel %vm842, %v1217, 0
      %1255 = vmatpush.bf16.msra.mxu0 0
      %1256 = vmatpush.bf16.msra.mxu0 0
      %1257 = vmatpush.bf16.msra.mxu0 0
      %1258 = vmatpush.bf16.msra.mxu0 0
      %1259 = vmatpush.bf16.msra.mxu0 0
      %1260 = vmatpush.bf16.msra.mxu0 0
      %1261 = vmatpush.bf16.msra.mxu0 0
      %1262 = vmatpush.bf16.msra.mxu0 %v1253
      %1263 = vmatmul.bf16.gmra.mxu0 %v1250
      %v1264 = vpop.f32.mrf.mxu0
      %v1265 = vadd.f32 0.0, %v1264
      %v1266 = vpop.f32.mrf.mxu0
      %1267 = vdwg.mxu0
      %1269 = vrot.lane.b32.xlu0 %v1215, 120
      %v1270 = vpop.permute.xlu0 %1269
      %1272 = vrot.lane.b32.xlu0 %v1216, 120
      %v1273 = vpop.permute.xlu0 %1272
      %v1275 = vsel %vm807, %v1270, 0
      %v1278 = vsel %vm807, %v1273, 0
      %1280 = vmatpush.bf16.xpose.msra.mxu0 0
      %1281 = vmatpush.bf16.xpose.msra.mxu0 0
      %1282 = vmatpush.bf16.xpose.msra.mxu0 0
      %1283 = vmatpush.bf16.xpose.msra.mxu0 0
      %1284 = vmatpush.bf16.xpose.msra.mxu0 0
      %1285 = vmatpush.bf16.xpose.msra.mxu0 0
      %1286 = vmatpush.bf16.xpose.msra.mxu0 0
      %1287 = vmatpush.bf16.xpose.msra.mxu0 %v1278
      %1288 = vmatmul.bf16.gmra.mxu0 %v1275
      %v1289 = vpop.f32.mrf.mxu0
      %v1290 = vadd.f32 0.0, %v1289
      %v1291 = vpop.f32.mrf.mxu0
      %1292 = vdwg.mxu0
      %v1293 = vsel %vm807, %v1290, -inf
      %1294 = vmax.xlane.f32.xlu0 %v1293
      %v1295 = vpop.xlane.xlu0 %1294
      %v1296 = vsub.f32 %v1290, %v1295
      %v1297 = vmul.f32 %v1296, 1.442695
      %v1298 = vpow.pop %v1297
      %v1299 = vsel %vm807, %v1298, 0.0
      %1300 = vadd.xlane.f32.xlu0 %v1299
      %v1301 = vpop.xlane.xlu0 %1300
      %v1302 = vrcp.pop %v1301
      %v1303 = vmul.f32 %v1298, %v1302
      %v1304 = vpack.c.bf16 %v1303, %v1303
      %1306 = vrot.lane.b32.xlu0 %v1217, 120
      %v1307 = vpop.permute.xlu0 %1306
      %v1309 = vsel %vm807, %v1304, 0
      %v1312 = vsel %vm842, %v1307, 0
      %1314 = vmatpush.bf16.msra.mxu0 0
      %1315 = vmatpush.bf16.msra.mxu0 0
      %1316 = vmatpush.bf16.msra.mxu0 0
      %1317 = vmatpush.bf16.msra.mxu0 0
      %1318 = vmatpush.bf16.msra.mxu0 0
      %1319 = vmatpush.bf16.msra.mxu0 0
      %1320 = vmatpush.bf16.msra.mxu0 0
      %1321 = vmatpush.bf16.msra.mxu0 %v1312
      %1322 = vmatmul.bf16.gmra.mxu0 %v1309
      %v1323 = vpop.f32.mrf.mxu0
      %v1324 = vadd.f32 0.0, %v1323
      %v1325 = vpop.f32.mrf.mxu0
      %1326 = vdwg.mxu0
      %1327 = vrot.lane.b32.xlu0 %v1215, 112
      %v1328 = vpop.permute.xlu0 %1327
      %1329 = vrot.lane.b32.xlu0 %v1216, 112
      %v1330 = vpop.permute.xlu0 %1329
      %v1332 = vsel %vm807, %v1328, 0
      %v1335 = vsel %vm807, %v1330, 0
      %1337 = vmatpush.bf16.xpose.msra.mxu0 0
      %1338 = vmatpush.bf16.xpose.msra.mxu0 0
      %1339 = vmatpush.bf16.xpose.msra.mxu0 0
      %1340 = vmatpush.bf16.xpose.msra.mxu0 0
      %1341 = vmatpush.bf16.xpose.msra.mxu0 0
      %1342 = vmatpush.bf16.xpose.msra.mxu0 0
      %1343 = vmatpush.bf16.xpose.msra.mxu0 0
      %1344 = vmatpush.bf16.xpose.msra.mxu0 %v1335
      %1345 = vmatmul.bf16.gmra.mxu0 %v1332
      %v1346 = vpop.f32.mrf.mxu0
      %v1347 = vadd.f32 0.0, %v1346
      %v1348 = vpop.f32.mrf.mxu0
      %1349 = vdwg.mxu0
      %v1350 = vsel %vm807, %v1347, -inf
      %1351 = vmax.xlane.f32.xlu0 %v1350
      %v1352 = vpop.xlane.xlu0 %1351
      %v1353 = vsub.f32 %v1347, %v1352
      %v1354 = vmul.f32 %v1353, 1.442695
      %v1355 = vpow.pop %v1354
      %v1356 = vsel %vm807, %v1355, 0.0
      %1357 = vadd.xlane.f32.xlu0 %v1356
      %v1358 = vpop.xlane.xlu0 %1357
      %v1359 = vrcp.pop %v1358
      %v1360 = vmul.f32 %v1355, %v1359
      %v1361 = vpack.c.bf16 %v1360, %v1360
      %1362 = vrot.lane.b32.xlu0 %v1217, 112
      %v1363 = vpop.permute.xlu0 %1362
      %v1365 = vsel %vm807, %v1361, 0
      %v1368 = vsel %vm842, %v1363, 0
      %1370 = vmatpush.bf16.msra.mxu0 0
      %1371 = vmatpush.bf16.msra.mxu0 0
      %1372 = vmatpush.bf16.msra.mxu0 0
      %1373 = vmatpush.bf16.msra.mxu0 0
      %1374 = vmatpush.bf16.msra.mxu0 0
      %1375 = vmatpush.bf16.msra.mxu0 0
      %1376 = vmatpush.bf16.msra.mxu0 0
      %1377 = vmatpush.bf16.msra.mxu0 %v1368
      %1378 = vmatmul.bf16.gmra.mxu0 %v1365
      %v1379 = vpop.f32.mrf.mxu0
      %v1380 = vadd.f32 0.0, %v1379
      %v1381 = vpop.f32.mrf.mxu0
      %1382 = vdwg.mxu0
      %1383 = vrot.lane.b32.xlu0 %v1215, 104
      %v1384 = vpop.permute.xlu0 %1383
      %1385 = vrot.lane.b32.xlu0 %v1216, 104
      %v1386 = vpop.permute.xlu0 %1385
      %v1388 = vsel %vm807, %v1384, 0
      %v1391 = vsel %vm807, %v1386, 0
      %1393 = vmatpush.bf16.xpose.msra.mxu0 0
      %1394 = vmatpush.bf16.xpose.msra.mxu0 0
      %1395 = vmatpush.bf16.xpose.msra.mxu0 0
      %1396 = vmatpush.bf16.xpose.msra.mxu0 0
      %1397 = vmatpush.bf16.xpose.msra.mxu0 0
      %1398 = vmatpush.bf16.xpose.msra.mxu0 0
      %1399 = vmatpush.bf16.xpose.msra.mxu0 0
      %1400 = vmatpush.bf16.xpose.msra.mxu0 %v1391
      %1401 = vmatmul.bf16.gmra.mxu0 %v1388
      %v1402 = vpop.f32.mrf.mxu0
      %v1403 = vadd.f32 0.0, %v1402
      %v1404 = vpop.f32.mrf.mxu0
      %1405 = vdwg.mxu0
      %v1406 = vsel %vm807, %v1403, -inf
      %1407 = vmax.xlane.f32.xlu0 %v1406
      %v1408 = vpop.xlane.xlu0 %1407
      %v1409 = vsub.f32 %v1403, %v1408
      %v1410 = vmul.f32 %v1409, 1.442695
      %v1411 = vpow.pop %v1410
      %v1412 = vsel %vm807, %v1411, 0.0
      %1413 = vadd.xlane.f32.xlu0 %v1412
      %v1414 = vpop.xlane.xlu0 %1413
      %v1415 = vrcp.pop %v1414
      %v1416 = vmul.f32 %v1411, %v1415
      %v1417 = vpack.c.bf16 %v1416, %v1416
      %1418 = vrot.lane.b32.xlu0 %v1217, 104
      %v1419 = vpop.permute.xlu0 %1418
      %v1421 = vsel %vm807, %v1417, 0
      %v1424 = vsel %vm842, %v1419, 0
      %1426 = vmatpush.bf16.msra.mxu0 0
      %1427 = vmatpush.bf16.msra.mxu0 0
      %1428 = vmatpush.bf16.msra.mxu0 0
      %1429 = vmatpush.bf16.msra.mxu0 0
      %1430 = vmatpush.bf16.msra.mxu0 0
      %1431 = vmatpush.bf16.msra.mxu0 0
      %1432 = vmatpush.bf16.msra.mxu0 0
      %1433 = vmatpush.bf16.msra.mxu0 %v1424
      %1434 = vmatmul.bf16.gmra.mxu0 %v1421
      %v1435 = vpop.f32.mrf.mxu0
      %v1436 = vadd.f32 0.0, %v1435
      %v1437 = vpop.f32.mrf.mxu0
      %1438 = vdwg.mxu0
      %1440 = vrot.lane.b32.xlu0 %v1324, 8
      %v1441 = vpop.permute.xlu0 %1440
      %1444 = vrot.lane.b32.xlu0 %v1380, 16
      %v1445 = vpop.permute.xlu0 %1444
      %1448 = vrot.lane.b32.xlu0 %v1436, 24
      %v1449 = vpop.permute.xlu0 %1448
      %v1451 = vsel %vm807, %v1265, %v1441
      %v1452 = vsel %vm1042, %v1451, %v1445
      %v1453 = vsel %vm1044, %v1452, %v1449
      %v1454 = vld [vmem:[%s12] sm:$0xf]
      %v1455 = vld [vmem:[%s12 + $0x4] sm:$0xf]
      %v1456 = vld [vmem:[%s12 + $0x8] sm:$0xf]
      %v1457 = vld [vmem:[%s12 + $0xc] sm:$0xf]
      %v1458 = vld [vmem:[%s13] sm:$0x1]
      %v1459 = vpack.c.bf16 %v1453, %v1453
      %v1461 = vperm.slane %v1458, 0
      %v1467 = vunpack.c.l.b16 %v1454
      %v1468 = vunpack.c.l.b16 %v1455
      %v1469 = vunpack.c.l.b16 %v1456
      %v1470 = vunpack.c.l.b16 %v1457
      %v1471 = vpack.c.b16 %v1468, %v1467
      %v1472 = vpack.c.b16 %v1470, %v1469
      %v1476 = vsel %vm757, %v1459, 0
      %1478 = vmatpush.bf16.msra.mxu0 0
      %1479 = vmatpush.bf16.msra.mxu0 0
      %1480 = vmatpush.bf16.msra.mxu0 0
      %1481 = vmatpush.bf16.msra.mxu0 0
      %1482 = vmatpush.bf16.msra.mxu0 0
      %1483 = vmatpush.bf16.msra.mxu0 0
      %1484 = vmatpush.bf16.msra.mxu0 %v1472
      %1485 = vmatpush.bf16.msra.mxu0 %v1471
      %1486 = vmatmul.bf16.gmra.mxu0 %v1476
      %v1487 = vpop.f32.mrf.mxu0
      %v1488 = vadd.f32 %v1461, %v1487
      %v1489 = vpop.f32.mrf.mxu0
      %1490 = vdwg.mxu0
      %v1491 = vadd.f32 %v1122, %v1488
      %v1492 = vld [vmem:[%s14] sm:$0x1]
      %v1493 = vld [vmem:[%s15] sm:$0x1]
      %v1494 = vsel %vm757, %v1491, 0.0
      %1495 = vadd.xlane.f32.xlu0 %v1494
      %v1496 = vpop.xlane.xlu0 %1495
      %v1497 = vmul.f32 %v1496, %v1095
      %v1498 = vsub.f32 %v1491, %v1497
      %v1499 = vmul.f32 %v1498, %v1498
      %v1500 = vsel %vm757, %v1499, 0.0
      %1501 = vadd.xlane.f32.xlu0 %v1500
      %v1502 = vpop.xlane.xlu0 %1501
      %v1503 = vmul.f32 %v1502, %v1095
      %v1504 = vadd.f32 %v1503, 1e-05
      %v1505 = vrsqrt.pop %v1504
      %v1506 = vmul.f32 %v1505, %v1504
      %v1507 = vmul.f32 %v1506, %v1505
      %v1508 = vmul.f32 0.5, %v1507
      %v1509 = vsub.f32 1.5, %v1508
      %v1510 = vmul.f32 %v1505, %v1509
      %vm1511 = vweird.f32 %v1504
      %vm1512 = vweird.f32 %v1505
      %vm1513 = vmor %vm1511, %vm1512
      %v1514 = vsel %vm1513, %v1505, %v1510
      %v1515 = vmul.f32 %v1498, %v1514
      %v1517 = vperm.slane %v1492, 0
      %v1519 = vmul.f32 %v1515, %v1517
      %v1521 = vperm.slane %v1493, 0
      %v1523 = vadd.f32 %v1519, %v1521
      %v1524 = vld [vmem:[%s16] sm:$0xf]
      %v1525 = vld [vmem:[%s16 + $0x4] sm:$0xf]
      %v1526 = vld [vmem:[%s16 + $0x8] sm:$0xf]
      %v1527 = vld [vmem:[%s16 + $0xc] sm:$0xf]
      %v1528 = vld [vmem:[%s17] sm:$0x1]
      %v1529 = vpack.c.bf16 %v1523, %v1523
      %v1531 = vperm.slane %v1528, 0
      %v1537 = vunpack.c.l.b16 %v1524
      %v1538 = vunpack.c.l.b16 %v1525
      %v1539 = vunpack.c.l.b16 %v1526
      %v1540 = vunpack.c.l.b16 %v1527
      %v1541 = vpack.c.b16 %v1538, %v1537
      %v1542 = vpack.c.b16 %v1540, %v1539
      %v1546 = vsel %vm757, %v1529, 0
      %1548 = vmatpush.bf16.msra.mxu0 0
      %1549 = vmatpush.bf16.msra.mxu0 0
      %1550 = vmatpush.bf16.msra.mxu0 0
      %1551 = vmatpush.bf16.msra.mxu0 0
      %1552 = vmatpush.bf16.msra.mxu0 0
      %1553 = vmatpush.bf16.msra.mxu0 0
      %1554 = vmatpush.bf16.msra.mxu0 %v1542
      %1555 = vmatpush.bf16.msra.mxu0 %v1541
      %1556 = vmatmul.bf16.gmra.mxu0 %v1546
      %v1557 = vpop.f32.mrf.mxu0
      %v1558 = vadd.f32 %v1531, %v1557
      %v1559 = vpop.f32.mrf.mxu0
      %1560 = vdwg.mxu0
      %v1561 = vmax.f32 %v1558, 0.0
      %v1562 = vld [vmem:[%s18] sm:$0xf]
      %v1563 = vld [vmem:[%s18 + $0x4] sm:$0xf]
      %v1564 = vld [vmem:[%s18 + $0x8] sm:$0xf]
      %v1565 = vld [vmem:[%s18 + $0xc] sm:$0xf]
      %v1566 = vld [vmem:[%s18 + $0x10] sm:$0xf]
      %v1567 = vld [vmem:[%s18 + $0x14] sm:$0xf]
      %v1568 = vld [vmem:[%s18 + $0x18] sm:$0xf]
      %v1569 = vld [vmem:[%s18 + $0x1c] sm:$0xf]
      %v1570 = vld [vmem:[%s19] sm:$0x1]
      %v1571 = vpack.c.bf16 %v1561, %v1561
      %v1573 = vperm.slane %v1570, 0
      %v1583 = vunpack.c.l.b16 %v1562
      %v1584 = vunpack.c.l.b16 %v1563
      %v1585 = vunpack.c.l.b16 %v1564
      %v1586 = vunpack.c.l.b16 %v1565
      %v1587 = vunpack.c.l.b16 %v1566
      %v1588 = vunpack.c.l.b16 %v1567
      %v1589 = vunpack.c.l.b16 %v1568
      %v1590 = vunpack.c.l.b16 %v1569
      %v1591 = vpack.c.b16 %v1584, %v1583
      %v1592 = vpack.c.b16 %v1586, %v1585
      %v1593 = vpack.c.b16 %v1588, %v1587
      %v1594 = vpack.c.b16 %v1590, %v1589
      %vm1599 = vcmask 523264
      %v1601 = vsel %vm1599, %v1571, 0
      %1603 = vmatpush.bf16.msra.mxu0 0
      %1604 = vmatpush.bf16.msra.mxu0 0
      %1605 = vmatpush.bf16.msra.mxu0 0
      %1606 = vmatpush.bf16.msra.mxu0 0
      %1607 = vmatpush.bf16.msra.mxu0 %v1594
      %1608 = vmatpush.bf16.msra.mxu0 %v1593
      %1609 = vmatpush.bf16.msra.mxu0 %v1592
      %1610 = vmatpush.bf16.msra.mxu0 %v1591
      %1611 = vmatmul.bf16.gmra.mxu0 %v1601
      %v1612 = vpop.f32.mrf.mxu0
      %v1613 = vadd.f32 %v1573, %v1612
      %v1614 = vpop.f32.mrf.mxu0
      %1615 = vdwg.mxu0
      %v1616 = vadd.f32 %v1523, %v1613
      %v1617 = vld [vmem:[%s20] sm:$0x1]
      %v1618 = vld [vmem:[%s21] sm:$0x1]
      %v1619 = vsel %vm757, %v1616, 0.0
      %1620 = vadd.xlane.f32.xlu0 %v1619
      %v1621 = vpop.xlane.xlu0 %1620
      %v1622 = vmul.f32 %v1621, %v1095
      %v1623 = vsub.f32 %v1616, %v1622
      %v1624 = vmul.f32 %v1623, %v1623
      %v1625 = vsel %vm757, %v1624, 0.0
      %1626 = vadd.xlane.f32.xlu0 %v1625
      %v1627 = vpop.xlane.xlu0 %1626
      %v1628 = vmul.f32 %v1627, %v1095
      %v1629 = vadd.f32 %v1628, 1e-05
      %v1630 = vrsqrt.pop %v1629
      %v1631 = vmul.f32 %v1630, %v1629
      %v1632 = vmul.f32 %v1631, %v1630
      %v1633 = vmul.f32 0.5, %v1632
      %v1634 = vsub.f32 1.5, %v1633
      %v1635 = vmul.f32 %v1630, %v1634
      %vm1636 = vweird.f32 %v1629
      %vm1637 = vweird.f32 %v1630
      %vm1638 = vmor %vm1636, %vm1637
      %v1639 = vsel %vm1638, %v1630, %v1635
      %v1640 = vmul.f32 %v1623, %v1639
      %v1642 = vperm.slane %v1617, 0
      %v1644 = vmul.f32 %v1640, %v1642
      %v1646 = vperm.slane %v1618, 0
      %v1648 = vadd.f32 %v1644, %v1646
      %1649 = vst.msk [vmem:[%s729] sm:$0xff] %vm757, %v1648
      %p1650 = scmp.lt.s32.totalorder %s33, 1
      %s1651 = scalar_select %p1650, %s33, 1
      %s1652 = smul.addr %s1651, 8
      %s1653 = scalar_lea.vmem %s22, %s1652
      // Predicated region
      $region109: #{transformer_decoder_layer.1} parent=107 // pred_check
        %p1654 = pneg %p533
      $region110: #{transformer_decoder_layer.1} parent=107 // pred_check_branch
        %1656 = sbr.rel (%p1654) target = $region112
      $region111: #{transformer_decoder_layer.1} parent=107 // pred_region
        _
      $region112: #{transformer_decoder_layer.1} parent=107 // pred_fallthru
        _
    $region108: #{transformer_decoder_layer.1} parent=5 // pred_fallthru
      _
    %p1657 = scmp.le.s32.totalorder 2, %s28
    // Predicated region
    $region113: #{transformer_decoder_layer.1} parent=5 // pred_check
      %p1658 = pneg %p1657
    $region114: #{transformer_decoder_layer.1} parent=5 // pred_check_branch
      %1660 = sbr.rel (%p1658) target = $region116
    $region115: #{transformer_decoder_layer.1} parent=5 // pred_region
      %s1661 = ssub.s32 %s28, 2
      // Predicated region
      $region117: #{transformer_decoder_layer.1} parent=115 // pred_check
        %p1662 = pneg %p539
      $region118: #{transformer_decoder_layer.1} parent=115 // pred_check_branch
        %1664 = sbr.rel (%p1662) target = $region120
      $region119: #{transformer_decoder_layer.1} parent=115 // pred_region
        %p1665 = scmp.lt.s32.totalorder %s34, 1
        %s1666 = scalar_select %p1665, %s34, 1
        %s1667 = smul.addr %s1666, 8
        %s1668 = scalar_lea.vmem %s22, %s1667
      $region120: #{transformer_decoder_layer.1} parent=115 // pred_fallthru
        _
    $region116: #{transformer_decoder_layer.1} parent=5 // pred_fallthru
      _
  $region6: #{transformer_decoder_layer.1} parent=0 // loop_footer
    %s32 = sadd.s32 1, %s28
  $region7: #{transformer_decoder_layer.1} parent=0 // loop_footer_branch
    %27 = sbr.rel target = $region3
  $region8: #{transformer_decoder_layer.1} parent=0 // loop_exit
    _

</llo_original>
